<compile_context>
chip_gen: v7x
topology: tpu7x:2x2x1
jax: 0.10.0
libtpu: 0.0.40
codegen_flags: <defaults>
</compile_context>

<pallas_src>
import functools

import jax
import jax.numpy as jnp
import numpy as np
from jax.experimental import pallas as pl
from jax.experimental.pallas import tpu as pltpu


def bottleneck_kernel(x_ref, mask_ref, w1_ref, b1_ref, w2_ref, b2_ref,
                      w3_ref, b3_ref, o_ref, *, H, W):
    """Per-grid-step view: one image, channel-major (channels, H*W)."""
    HW = x_ref.shape[1]

    x = x_ref[...].astype(jnp.float32)                          # (Cin, HW)

    # --- conv1 (1x1) + bn1 + relu  (scale pre-folded into w1) ----------------
    h1 = jnp.dot(w1_ref[...], x, preferred_element_type=jnp.float32)
    h1 = jnp.maximum(h1 + b1_ref[...], 0.0)                     # (Pp, HW)

    # --- conv2 (3x3, stride=1, pad=1) + bn2 + relu ---------------------------
    # Accumulate the 9 taps: lane l = h*W + w; tap (dh, dw) is a flat shift of
    # dh*W + dw, valid only where (h+dh, w+dw) stays in-image.  Validity masks
    # are precomputed in the wrapper (mask_ref, resident).  Rolls go to the XLU
    # slot; each tap's matmul is a tiny (Pp,Pp)x(Pp,HW) MXU push (MXU has slack).
    h2 = None
    for kh in range(3):
        for kw in range(3):
            t = kh * 3 + kw
            dh, dw = kh - 1, kw - 1
            s = dh * W + dw
            if s == 0:
                piece = h1
            else:
                rolled = pltpu.roll(h1, shift=(-s) % HW, axis=1)  # rolled[l] = h1[l+s]
                piece = rolled * mask_ref[pl.ds(t, 1), :]          # (Pp, HW)
            contrib = jnp.dot(w2_ref[t], piece,
                              preferred_element_type=jnp.float32)
            h2 = contrib if h2 is None else h2 + contrib
    h2 = jnp.maximum(h2 + b2_ref[...], 0.0)                     # (Pp, HW)

    # --- conv3 (1x1) + bn3 + residual + relu ---------------------------------
    h3 = jnp.dot(w3_ref[...], h2, preferred_element_type=jnp.float32)
    h3 = h3 + b3_ref[...]                                       # (Cout, HW)
    o_ref[...] = jnp.maximum(h3 + x, 0.0).astype(o_ref.dtype)


def bottleneck_pallas(x_cf, masks, w1, b1, w2, b2, w3, b3, *, N, H, W):
    """x_cf: (Cin, N*H*W), lane order l = n*H*W + h*W + w.
    Weights already BN-scale-folded and zero-padded to Pp sublanes."""
    Cin, NHW = x_cf.shape
    HW = H * W
    assert NHW == N * HW
    Cout = w3.shape[0]
    assert Cin == Cout, "residual add requires Cin == Cout (downsample=None)"

    def resident(a):
        nd = a.ndim
        return pl.BlockSpec(a.shape, lambda n, _nd=nd: (0,) * _nd)

    kernel = functools.partial(bottleneck_kernel, H=H, W=W)
    return pl.pallas_call(
        kernel,
        out_shape=jax.ShapeDtypeStruct((Cout, NHW), x_cf.dtype),
        grid_spec=pltpu.PrefetchScalarGridSpec(
            num_scalar_prefetch=0,
            grid=(N,),                                  # one grid step per image
            in_specs=[pl.BlockSpec((Cin, HW), lambda n: (0, n)),
                      resident(masks),
                      resident(w1), resident(b1),
                      resident(w2), resident(b2),
                      resident(w3), resident(b3)],
            out_specs=pl.BlockSpec((Cout, HW), lambda n: (0, n)),
        ),
        compiler_params=pltpu.CompilerParams(
            dimension_semantics=("parallel",),          # megacore / v7x dual-TC
            vmem_limit_bytes=64 * 1024 * 1024),
    )(x_cf, masks, w1, b1, w2, b2, w3, b3)


# ----------------------------- pure-JAX reference ----------------------------
def ref_forward(x_nchw, w1_t, w2_t, w3_t, s1, b1, s2, b2, s3, b3):
    def conv(x, w, pad):
        return jax.lax.conv_general_dilated(
            x, w, (1, 1), [(pad, pad), (pad, pad)],
            dimension_numbers=('NCHW', 'OIHW', 'NCHW'))

    def bn(x, s, b):
        return x * s[None, :, None, None] + b[None, :, None, None]

    out = jax.nn.relu(bn(conv(x_nchw, w1_t, 0), s1, b1))
    out = jax.nn.relu(bn(conv(out, w2_t, 1), s2, b2))
    out = bn(conv(out, w3_t, 0), s3, b3)
    return jax.nn.relu(out + x_nchw)


if __name__ == "__main__":
    N, H, W = 2, 16, 16
    planes = 4
    expansion = 4
    inplanes = planes * expansion          # residual add requires Cin == Cout
    Cout = planes * expansion
    eps = 1e-5
    HW = H * W
    NHW = N * HW

    ks = jax.random.split(jax.random.PRNGKey(0), 16)

    # PyTorch-shaped conv weights (OIHW), bias=False.
    w1_t = jax.random.normal(ks[0], (planes, inplanes, 1, 1), jnp.float32) * 0.1
    w2_t = jax.random.normal(ks[1], (planes, planes, 3, 3), jnp.float32) * 0.1
    w3_t = jax.random.normal(ks[2], (Cout, planes, 1, 1), jnp.float32) * 0.1

    def bn_fold(kg, kb, km, kv, c):
        gamma = 1.0 + 0.1 * jax.random.normal(kg, (c,), jnp.float32)
        beta = 0.1 * jax.random.normal(kb, (c,), jnp.float32)
        mean = 0.1 * jax.random.normal(km, (c,), jnp.float32)
        var = jax.nn.softplus(jax.random.normal(kv, (c,), jnp.float32)) + 0.5
        scale = gamma / jnp.sqrt(var + eps)
        bias = beta - mean * scale
        return scale, bias

    s1, b1 = bn_fold(ks[3], ks[4], ks[5], ks[6], planes)
    s2, b2 = bn_fold(ks[7], ks[8], ks[9], ks[10], planes)
    s3, b3 = bn_fold(ks[11], ks[12], ks[13], ks[14], Cout)

    x_nchw = jax.random.normal(ks[15], (N, inplanes, H, W), jnp.float32)

    # ---- kernel-layout parameters (wrapper-side layout plumbing) ------------
    # Channels on sublanes, flattened (n, h, w) spatial on lanes.
    x_cf = jnp.transpose(x_nchw, (1, 0, 2, 3)).reshape(inplanes, NHW)

    # Pad bottleneck width P -> Pp (f32 sublane multiple) with zero rows/cols.
    P = planes
    Pp = max(8, ((P + 7) // 8) * 8)

    # Fold BN scale into conv weights (row = output channel), then zero-pad.
    w1_k = jnp.zeros((Pp, inplanes), jnp.float32).at[:P].set(
        w1_t[:, :, 0, 0] * s1[:, None])                                  # (Pp, Cin)
    b1_k = jnp.zeros((Pp, 1), jnp.float32).at[:P].set(b1.reshape(-1, 1))

    w2_s = w2_t * s2[:, None, None, None]                                # (P, P, 3, 3)
    w2_taps = jnp.transpose(w2_s, (2, 3, 0, 1)).reshape(9, P, P)         # tap (kh,kw)
    w2_k = jnp.zeros((9, Pp, Pp), jnp.float32).at[:, :P, :P].set(w2_taps)
    b2_k = jnp.zeros((Pp, 1), jnp.float32).at[:P].set(b2.reshape(-1, 1))

    w3_k = jnp.zeros((Cout, Pp), jnp.float32).at[:, :P].set(
        w3_t[:, :, 0, 0] * s3[:, None])                                  # (Cout, Pp)
    b3_k = b3.reshape(-1, 1)

    # Precompute the 9 per-tap boundary validity masks (hoisted out of kernel).
    hw = np.arange(HW)
    h_idx, w_idx = hw // W, hw % W
    masks_np = np.zeros((9, HW), np.float32)
    for kh in range(3):
        for kw in range(3):
            dh, dw = kh - 1, kw - 1
            valid = ((h_idx + dh >= 0) & (h_idx + dh < H) &
                     (w_idx + dw >= 0) & (w_idx + dw < W))
            masks_np[kh * 3 + kw] = valid.astype(np.float32)
    masks = jnp.asarray(masks_np)

    out_cf = bottleneck_pallas(x_cf, masks, w1_k, b1_k, w2_k, b2_k, w3_k, b3_k,
                               N=N, H=H, W=W)
    out_cf = jax.block_until_ready(out_cf)
    out_nchw = jnp.transpose(out_cf.reshape(Cout, N, H, W), (1, 0, 2, 3))

    ref = ref_forward(x_nchw, w1_t, w2_t, w3_t, s1, b1, s2, b2, s3, b3)
    ref = jax.block_until_ready(ref)

    assert out_nchw.shape == ref.shape == (N, Cout, H, W)
    np.testing.assert_allclose(np.asarray(out_nchw), np.asarray(ref),
                               rtol=1e-3, atol=1e-3)
    print("KERNEL_OK")
</pallas_src>

<mosaic_0001>
module attributes {stable_mosaic.version = 11 : i64} {
  func.func @bottleneck_kernel(%arg0: i32, %arg1: memref<16x256xf32, #tpu.memory_space<vmem>>, %arg2: memref<9x256xf32, #tpu.memory_space<vmem>>, %arg3: memref<8x16xf32, #tpu.memory_space<vmem>>, %arg4: memref<8x1xf32, #tpu.memory_space<vmem>>, %arg5: memref<9x8x8xf32, #tpu.memory_space<vmem>>, %arg6: memref<8x1xf32, #tpu.memory_space<vmem>>, %arg7: memref<16x8xf32, #tpu.memory_space<vmem>>, %arg8: memref<16x1xf32, #tpu.memory_space<vmem>>, %arg9: memref<16x256xf32, #tpu.memory_space<vmem>>) attributes {dimension_semantics = [#tpu.dimension_semantics<parallel>], iteration_bounds = array<i64: 2>, scalar_prefetch = 0 : i64, scratch_operands = 0 : i64, tpu.core_type = #tpu.core_type<tc>, window_params = [{transform_indices = @transform_0, window_bounds = array<i64: 16, 256>}, {pipeline_mode = #tpu.pipeline_mode<synchronous>, transform_indices = @transform_1, window_bounds = array<i64: 9, 256>}, {pipeline_mode = #tpu.pipeline_mode<synchronous>, transform_indices = @transform_2, window_bounds = array<i64: 8, 16>}, {pipeline_mode = #tpu.pipeline_mode<synchronous>, transform_indices = @transform_3, window_bounds = array<i64: 8, 1>}, {pipeline_mode = #tpu.pipeline_mode<synchronous>, transform_indices = @transform_4, window_bounds = array<i64: 9, 8, 8>}, {pipeline_mode = #tpu.pipeline_mode<synchronous>, transform_indices = @transform_5, window_bounds = array<i64: 8, 1>}, {pipeline_mode = #tpu.pipeline_mode<synchronous>, transform_indices = @transform_6, window_bounds = array<i64: 16, 8>}, {pipeline_mode = #tpu.pipeline_mode<synchronous>, transform_indices = @transform_7, window_bounds = array<i64: 16, 1>}, {transform_indices = @transform_8, window_bounds = array<i64: 16, 256>}]} {
    %c0 = arith.constant 0 : index
    %c0_0 = arith.constant 0 : index
    %0 = vector.load %arg1[%c0, %c0_0] : memref<16x256xf32, #tpu.memory_space<vmem>>, vector<16x256xf32>
    %c0_1 = arith.constant 0 : index
    %c0_2 = arith.constant 0 : index
    %1 = vector.load %arg3[%c0_1, %c0_2] : memref<8x16xf32, #tpu.memory_space<vmem>>, vector<8x16xf32>
    %cst = arith.constant dense<0.000000e+00> : vector<8x256xf32>
    %2 = tpu.matmul %1, %0, %cst {dimension_numbers = #tpu.dot_dimension_numbers<[1], [0], [0], [1], [0, 0, 1, 1], [], []>} : vector<8x16xf32>, vector<16x256xf32>, vector<8x256xf32> -> vector<8x256xf32>
    %c0_3 = arith.constant 0 : index
    %c0_4 = arith.constant 0 : index
    %3 = vector.load %arg4[%c0_3, %c0_4] : memref<8x1xf32, #tpu.memory_space<vmem>>, vector<8x1xf32>
    %4 = vector.broadcast %3 : vector<8x1xf32> to vector<8x256xf32>
    %5 = arith.addf %2, %4 : vector<8x256xf32>
    %cst_5 = arith.constant 0.000000e+00 : f32
    %6 = vector.broadcast %cst_5 : f32 to vector<8x256xf32>
    %7 = arith.maximumf %5, %6 : vector<8x256xf32>
    %c17_i32 = arith.constant 17 : i32
    %8 = tpu.dynamic_rotate %7 by %c17_i32 dim 1 : vector<8x256xf32>, i32 -> vector<8x256xf32>
    %c0_6 = arith.constant 0 : index
    %c0_7 = arith.constant 0 : index
    %9 = vector.load %arg2[%c0_6, %c0_7] : memref<9x256xf32, #tpu.memory_space<vmem>>, vector<1x256xf32>
    %10 = vector.broadcast %9 : vector<1x256xf32> to vector<8x256xf32>
    %11 = arith.mulf %8, %10 : vector<8x256xf32>
    %c0_8 = arith.constant 0 : index
    %c0_9 = arith.constant 0 : index
    %c0_10 = arith.constant 0 : index
    %12 = vector.load %arg5[%c0_8, %c0_9, %c0_10] : memref<9x8x8xf32, #tpu.memory_space<vmem>>, vector<1x8x8xf32>
    %13 = vector.shape_cast %12 : vector<1x8x8xf32> to vector<8x8xf32>
    %cst_11 = arith.constant dense<0.000000e+00> : vector<8x256xf32>
    %14 = tpu.matmul %13, %11, %cst_11 {dimension_numbers = #tpu.dot_dimension_numbers<[1], [0], [0], [1], [0, 0, 1, 1], [], []>} : vector<8x8xf32>, vector<8x256xf32>, vector<8x256xf32> -> vector<8x256xf32>
    %c16_i32 = arith.constant 16 : i32
    %15 = tpu.dynamic_rotate %7 by %c16_i32 dim 1 : vector<8x256xf32>, i32 -> vector<8x256xf32>
    %c1 = arith.constant 1 : index
    %c0_12 = arith.constant 0 : index
    %16 = vector.load %arg2[%c1, %c0_12] : memref<9x256xf32, #tpu.memory_space<vmem>>, vector<1x256xf32>
    %17 = vector.broadcast %16 : vector<1x256xf32> to vector<8x256xf32>
    %18 = arith.mulf %15, %17 : vector<8x256xf32>
    %c1_13 = arith.constant 1 : index
    %c0_14 = arith.constant 0 : index
    %c0_15 = arith.constant 0 : index
    %19 = vector.load %arg5[%c1_13, %c0_14, %c0_15] : memref<9x8x8xf32, #tpu.memory_space<vmem>>, vector<1x8x8xf32>
    %20 = vector.shape_cast %19 : vector<1x8x8xf32> to vector<8x8xf32>
    %cst_16 = arith.constant dense<0.000000e+00> : vector<8x256xf32>
    %21 = tpu.matmul %20, %18, %cst_16 {dimension_numbers = #tpu.dot_dimension_numbers<[1], [0], [0], [1], [0, 0, 1, 1], [], []>} : vector<8x8xf32>, vector<8x256xf32>, vector<8x256xf32> -> vector<8x256xf32>
    %22 = arith.addf %14, %21 : vector<8x256xf32>
    %c15_i32 = arith.constant 15 : i32
    %23 = tpu.dynamic_rotate %7 by %c15_i32 dim 1 : vector<8x256xf32>, i32 -> vector<8x256xf32>
    %c2 = arith.constant 2 : index
    %c0_17 = arith.constant 0 : index
    %24 = vector.load %arg2[%c2, %c0_17] : memref<9x256xf32, #tpu.memory_space<vmem>>, vector<1x256xf32>
    %25 = vector.broadcast %24 : vector<1x256xf32> to vector<8x256xf32>
    %26 = arith.mulf %23, %25 : vector<8x256xf32>
    %c2_18 = arith.constant 2 : index
    %c0_19 = arith.constant 0 : index
    %c0_20 = arith.constant 0 : index
    %27 = vector.load %arg5[%c2_18, %c0_19, %c0_20] : memref<9x8x8xf32, #tpu.memory_space<vmem>>, vector<1x8x8xf32>
    %28 = vector.shape_cast %27 : vector<1x8x8xf32> to vector<8x8xf32>
    %cst_21 = arith.constant dense<0.000000e+00> : vector<8x256xf32>
    %29 = tpu.matmul %28, %26, %cst_21 {dimension_numbers = #tpu.dot_dimension_numbers<[1], [0], [0], [1], [0, 0, 1, 1], [], []>} : vector<8x8xf32>, vector<8x256xf32>, vector<8x256xf32> -> vector<8x256xf32>
    %30 = arith.addf %22, %29 : vector<8x256xf32>
    %c1_i32 = arith.constant 1 : i32
    %31 = tpu.dynamic_rotate %7 by %c1_i32 dim 1 : vector<8x256xf32>, i32 -> vector<8x256xf32>
    %c3 = arith.constant 3 : index
    %c0_22 = arith.constant 0 : index
    %32 = vector.load %arg2[%c3, %c0_22] : memref<9x256xf32, #tpu.memory_space<vmem>>, vector<1x256xf32>
    %33 = vector.broadcast %32 : vector<1x256xf32> to vector<8x256xf32>
    %34 = arith.mulf %31, %33 : vector<8x256xf32>
    %c3_23 = arith.constant 3 : index
    %c0_24 = arith.constant 0 : index
    %c0_25 = arith.constant 0 : index
    %35 = vector.load %arg5[%c3_23, %c0_24, %c0_25] : memref<9x8x8xf32, #tpu.memory_space<vmem>>, vector<1x8x8xf32>
    %36 = vector.shape_cast %35 : vector<1x8x8xf32> to vector<8x8xf32>
    %cst_26 = arith.constant dense<0.000000e+00> : vector<8x256xf32>
    %37 = tpu.matmul %36, %34, %cst_26 {dimension_numbers = #tpu.dot_dimension_numbers<[1], [0], [0], [1], [0, 0, 1, 1], [], []>} : vector<8x8xf32>, vector<8x256xf32>, vector<8x256xf32> -> vector<8x256xf32>
    %38 = arith.addf %30, %37 : vector<8x256xf32>
    %c4 = arith.constant 4 : index
    %c0_27 = arith.constant 0 : index
    %c0_28 = arith.constant 0 : index
    %39 = vector.load %arg5[%c4, %c0_27, %c0_28] : memref<9x8x8xf32, #tpu.memory_space<vmem>>, vector<1x8x8xf32>
    %40 = vector.shape_cast %39 : vector<1x8x8xf32> to vector<8x8xf32>
    %cst_29 = arith.constant dense<0.000000e+00> : vector<8x256xf32>
    %41 = tpu.matmul %40, %7, %cst_29 {dimension_numbers = #tpu.dot_dimension_numbers<[1], [0], [0], [1], [0, 0, 1, 1], [], []>} : vector<8x8xf32>, vector<8x256xf32>, vector<8x256xf32> -> vector<8x256xf32>
    %42 = arith.addf %38, %41 : vector<8x256xf32>
    %c255_i32 = arith.constant 255 : i32
    %43 = tpu.dynamic_rotate %7 by %c255_i32 dim 1 : vector<8x256xf32>, i32 -> vector<8x256xf32>
    %c5 = arith.constant 5 : index
    %c0_30 = arith.constant 0 : index
    %44 = vector.load %arg2[%c5, %c0_30] : memref<9x256xf32, #tpu.memory_space<vmem>>, vector<1x256xf32>
    %45 = vector.broadcast %44 : vector<1x256xf32> to vector<8x256xf32>
    %46 = arith.mulf %43, %45 : vector<8x256xf32>
    %c5_31 = arith.constant 5 : index
    %c0_32 = arith.constant 0 : index
    %c0_33 = arith.constant 0 : index
    %47 = vector.load %arg5[%c5_31, %c0_32, %c0_33] : memref<9x8x8xf32, #tpu.memory_space<vmem>>, vector<1x8x8xf32>
    %48 = vector.shape_cast %47 : vector<1x8x8xf32> to vector<8x8xf32>
    %cst_34 = arith.constant dense<0.000000e+00> : vector<8x256xf32>
    %49 = tpu.matmul %48, %46, %cst_34 {dimension_numbers = #tpu.dot_dimension_numbers<[1], [0], [0], [1], [0, 0, 1, 1], [], []>} : vector<8x8xf32>, vector<8x256xf32>, vector<8x256xf32> -> vector<8x256xf32>
    %50 = arith.addf %42, %49 : vector<8x256xf32>
    %c241_i32 = arith.constant 241 : i32
    %51 = tpu.dynamic_rotate %7 by %c241_i32 dim 1 : vector<8x256xf32>, i32 -> vector<8x256xf32>
    %c6 = arith.constant 6 : index
    %c0_35 = arith.constant 0 : index
    %52 = vector.load %arg2[%c6, %c0_35] : memref<9x256xf32, #tpu.memory_space<vmem>>, vector<1x256xf32>
    %53 = vector.broadcast %52 : vector<1x256xf32> to vector<8x256xf32>
    %54 = arith.mulf %51, %53 : vector<8x256xf32>
    %c6_36 = arith.constant 6 : index
    %c0_37 = arith.constant 0 : index
    %c0_38 = arith.constant 0 : index
    %55 = vector.load %arg5[%c6_36, %c0_37, %c0_38] : memref<9x8x8xf32, #tpu.memory_space<vmem>>, vector<1x8x8xf32>
    %56 = vector.shape_cast %55 : vector<1x8x8xf32> to vector<8x8xf32>
    %cst_39 = arith.constant dense<0.000000e+00> : vector<8x256xf32>
    %57 = tpu.matmul %56, %54, %cst_39 {dimension_numbers = #tpu.dot_dimension_numbers<[1], [0], [0], [1], [0, 0, 1, 1], [], []>} : vector<8x8xf32>, vector<8x256xf32>, vector<8x256xf32> -> vector<8x256xf32>
    %58 = arith.addf %50, %57 : vector<8x256xf32>
    %c240_i32 = arith.constant 240 : i32
    %59 = tpu.dynamic_rotate %7 by %c240_i32 dim 1 : vector<8x256xf32>, i32 -> vector<8x256xf32>
    %c7 = arith.constant 7 : index
    %c0_40 = arith.constant 0 : index
    %60 = vector.load %arg2[%c7, %c0_40] : memref<9x256xf32, #tpu.memory_space<vmem>>, vector<1x256xf32>
    %61 = vector.broadcast %60 : vector<1x256xf32> to vector<8x256xf32>
    %62 = arith.mulf %59, %61 : vector<8x256xf32>
    %c7_41 = arith.constant 7 : index
    %c0_42 = arith.constant 0 : index
    %c0_43 = arith.constant 0 : index
    %63 = vector.load %arg5[%c7_41, %c0_42, %c0_43] : memref<9x8x8xf32, #tpu.memory_space<vmem>>, vector<1x8x8xf32>
    %64 = vector.shape_cast %63 : vector<1x8x8xf32> to vector<8x8xf32>
    %cst_44 = arith.constant dense<0.000000e+00> : vector<8x256xf32>
    %65 = tpu.matmul %64, %62, %cst_44 {dimension_numbers = #tpu.dot_dimension_numbers<[1], [0], [0], [1], [0, 0, 1, 1], [], []>} : vector<8x8xf32>, vector<8x256xf32>, vector<8x256xf32> -> vector<8x256xf32>
    %66 = arith.addf %58, %65 : vector<8x256xf32>
    %c239_i32 = arith.constant 239 : i32
    %67 = tpu.dynamic_rotate %7 by %c239_i32 dim 1 : vector<8x256xf32>, i32 -> vector<8x256xf32>
    %c8 = arith.constant 8 : index
    %c0_45 = arith.constant 0 : index
    %68 = vector.load %arg2[%c8, %c0_45] : memref<9x256xf32, #tpu.memory_space<vmem>>, vector<1x256xf32>
    %69 = vector.broadcast %68 : vector<1x256xf32> to vector<8x256xf32>
    %70 = arith.mulf %67, %69 : vector<8x256xf32>
    %c8_46 = arith.constant 8 : index
    %c0_47 = arith.constant 0 : index
    %c0_48 = arith.constant 0 : index
    %71 = vector.load %arg5[%c8_46, %c0_47, %c0_48] : memref<9x8x8xf32, #tpu.memory_space<vmem>>, vector<1x8x8xf32>
    %72 = vector.shape_cast %71 : vector<1x8x8xf32> to vector<8x8xf32>
    %cst_49 = arith.constant dense<0.000000e+00> : vector<8x256xf32>
    %73 = tpu.matmul %72, %70, %cst_49 {dimension_numbers = #tpu.dot_dimension_numbers<[1], [0], [0], [1], [0, 0, 1, 1], [], []>} : vector<8x8xf32>, vector<8x256xf32>, vector<8x256xf32> -> vector<8x256xf32>
    %74 = arith.addf %66, %73 : vector<8x256xf32>
    %c0_50 = arith.constant 0 : index
    %c0_51 = arith.constant 0 : index
    %75 = vector.load %arg6[%c0_50, %c0_51] : memref<8x1xf32, #tpu.memory_space<vmem>>, vector<8x1xf32>
    %76 = vector.broadcast %75 : vector<8x1xf32> to vector<8x256xf32>
    %77 = arith.addf %74, %76 : vector<8x256xf32>
    %cst_52 = arith.constant 0.000000e+00 : f32
    %78 = vector.broadcast %cst_52 : f32 to vector<8x256xf32>
    %79 = arith.maximumf %77, %78 : vector<8x256xf32>
    %c0_53 = arith.constant 0 : index
    %c0_54 = arith.constant 0 : index
    %80 = vector.load %arg7[%c0_53, %c0_54] : memref<16x8xf32, #tpu.memory_space<vmem>>, vector<16x8xf32>
    %cst_55 = arith.constant dense<0.000000e+00> : vector<16x256xf32>
    %81 = tpu.matmul %80, %79, %cst_55 {dimension_numbers = #tpu.dot_dimension_numbers<[1], [0], [0], [1], [0, 0, 1, 1], [], []>} : vector<16x8xf32>, vector<8x256xf32>, vector<16x256xf32> -> vector<16x256xf32>
    %c0_56 = arith.constant 0 : index
    %c0_57 = arith.constant 0 : index
    %82 = vector.load %arg8[%c0_56, %c0_57] : memref<16x1xf32, #tpu.memory_space<vmem>>, vector<16x1xf32>
    %83 = vector.broadcast %82 : vector<16x1xf32> to vector<16x256xf32>
    %84 = arith.addf %81, %83 : vector<16x256xf32>
    %85 = arith.addf %84, %0 : vector<16x256xf32>
    %cst_58 = arith.constant 0.000000e+00 : f32
    %86 = vector.broadcast %cst_58 : f32 to vector<16x256xf32>
    %87 = arith.maximumf %85, %86 : vector<16x256xf32>
    %c0_59 = arith.constant 0 : index
    %c0_60 = arith.constant 0 : index
    %88 = vector.load %arg9[%c0_59, %c0_60] : memref<16x256xf32, #tpu.memory_space<vmem>>, vector<16x256xf32>
    tpu.vector_store %arg9[%c0_59, %c0_60], %87 {strides = array<i32>} : memref<16x256xf32, #tpu.memory_space<vmem>>, vector<16x256xf32>,
    return
  }
  func.func @transform_0(%arg0: i32) -> (i32, i32) {
    %c0_i32 = arith.constant 0 : i32
    %c0_i32_0 = arith.constant 0 : i32
    return %c0_i32, %arg0 : i32, i32
  }
  func.func @transform_1(%arg0: i32) -> (i32, i32) {
    %c0_i32 = arith.constant 0 : i32
    %c0_i32_0 = arith.constant 0 : i32
    %c0_i32_1 = arith.constant 0 : i32
    return %c0_i32, %c0_i32_0 : i32, i32
  }
  func.func @transform_2(%arg0: i32) -> (i32, i32) {
    %c0_i32 = arith.constant 0 : i32
    %c0_i32_0 = arith.constant 0 : i32
    %c0_i32_1 = arith.constant 0 : i32
    return %c0_i32, %c0_i32_0 : i32, i32
  }
  func.func @transform_3(%arg0: i32) -> (i32, i32) {
    %c0_i32 = arith.constant 0 : i32
    %c0_i32_0 = arith.constant 0 : i32
    %c0_i32_1 = arith.constant 0 : i32
    return %c0_i32, %c0_i32_0 : i32, i32
  }
  func.func @transform_4(%arg0: i32) -> (i32, i32, i32) {
    %c0_i32 = arith.constant 0 : i32
    %c0_i32_0 = arith.constant 0 : i32
    %c0_i32_1 = arith.constant 0 : i32
    %c0_i32_2 = arith.constant 0 : i32
    return %c0_i32, %c0_i32_0, %c0_i32_1 : i32, i32, i32
  }
  func.func @transform_5(%arg0: i32) -> (i32, i32) {
    %c0_i32 = arith.constant 0 : i32
    %c0_i32_0 = arith.constant 0 : i32
    %c0_i32_1 = arith.constant 0 : i32
    return %c0_i32, %c0_i32_0 : i32, i32
  }
  func.func @transform_6(%arg0: i32) -> (i32, i32) {
    %c0_i32 = arith.constant 0 : i32
    %c0_i32_0 = arith.constant 0 : i32
    %c0_i32_1 = arith.constant 0 : i32
    return %c0_i32, %c0_i32_0 : i32, i32
  }
  func.func @transform_7(%arg0: i32) -> (i32, i32) {
    %c0_i32 = arith.constant 0 : i32
    %c0_i32_0 = arith.constant 0 : i32
    %c0_i32_1 = arith.constant 0 : i32
    return %c0_i32, %c0_i32_0 : i32, i32
  }
  func.func @transform_8(%arg0: i32) -> (i32, i32) {
    %c0_i32 = arith.constant 0 : i32
    %c0_i32_0 = arith.constant 0 : i32
    return %c0_i32, %arg0 : i32, i32
  }
}

</mosaic_0001>

<llo_original>
// kernel: tpu_custom_call.1
$region0: #{tpu_custom_call.1}
  #allocation0 [shape = 'u32[]', space=smem, size = 0x4, offset = 0x4, fixed_abs, tag = 'smem constant byte address 0x4 - core index']
  #allocation1 [shape = 'u32[144,128]{1,0:T(1,128)}', space=vmem, size = 0x12000, scoped, tag = 'internal scratch']
  %s0 = inlined_call_operand.hbm [shape: f32[16,512], index: 0, kind: input, shape index: {}]
  %s1 = inlined_call_operand.hbm [shape: f32[9,256], index: 1, kind: input, shape index: {}]
  %s2 = inlined_call_operand.hbm [shape: f32[8,16], index: 2, kind: input, shape index: {}]
  %s3 = inlined_call_operand.hbm [shape: f32[8,1], index: 3, kind: input, shape index: {}]
  %s4 = inlined_call_operand.hbm [shape: f32[9,8,8], index: 4, kind: input, shape index: {}]
  %s5 = inlined_call_operand.hbm [shape: f32[8,1], index: 5, kind: input, shape index: {}]
  %s6 = inlined_call_operand.hbm [shape: f32[16,8], index: 6, kind: input, shape index: {}]
  %s7 = inlined_call_operand.hbm [shape: f32[16,1], index: 7, kind: input, shape index: {}]
  %s8 = inlined_call_operand.hbm [shape: f32[16,512], index: 8, kind: output, shape index: {}]
  %s9 = sld [smem:[#allocation0]]
  $region97: #{tpu_custom_call.1} parent=0
    _
  %s11 = ssub.s32 1, %s9
  %s12 = scalar_select 0, %s11, %s9
  $region1: #{tpu_custom_call.1} parent=0
    #allocation2 [shape = 'u8[32768]{0}', space=vmem, size = 0x8000, scoped, tag = 'input window, operand 0']
    #allocation3 [shape = 's32[2]{0}', space=sflag, size = 0x8, scoped, tag = 'scoped memory for tpu_custom_call.1']
    #allocation4 [shape = 's32[2]{0}', space=sflag, size = 0x8, scoped, tag = 'scoped memory for tpu_custom_call.1']
    #allocation5 [shape = 'u8[16384]{0}', space=vmem, size = 0x4000, scoped, tag = 'input window, operand 1, single buffered']
    #allocation6 [shape = 's32[1]{0}', space=sflag, size = 0x4, scoped, tag = 'scoped memory for tpu_custom_call.1']
    #allocation7 [shape = 'u8[4096]{0}', space=vmem, size = 0x1000, scoped, tag = 'input window, operand 2, single buffered']
    #allocation8 [shape = 'u8[4096]{0}', space=vmem, size = 0x1000, scoped, tag = 'input window, operand 3, single buffered']
    #allocation9 [shape = 's32[1]{0}', space=sflag, size = 0x4, scoped, tag = 'scoped memory for tpu_custom_call.1']
    #allocation10 [shape = 'u8[36864]{0}', space=vmem, size = 0x9000, scoped, tag = 'input window, operand 4, single buffered']
    #allocation11 [shape = 'u8[4096]{0}', space=vmem, size = 0x1000, scoped, tag = 'input window, operand 5, single buffered']
    #allocation12 [shape = 's32[1]{0}', space=sflag, size = 0x4, scoped, tag = 'scoped memory for tpu_custom_call.1']
    #allocation13 [shape = 'u8[8192]{0}', space=vmem, size = 0x2000, scoped, tag = 'input window, operand 6, single buffered']
    #allocation14 [shape = 'u8[8192]{0}', space=vmem, size = 0x2000, scoped, tag = 'input window, operand 7, single buffered']
    #allocation15 [shape = 's32[1]{0}', space=sflag, size = 0x4, scoped, tag = 'scoped memory for tpu_custom_call.1']
    #allocation16 [shape = 'u8[32768]{0}', space=vmem, size = 0x8000, scoped, tag = 'output window, operand 0']
    %13 = vsyncpa [#allocation3], 0
    %s14 = scalar_lea.sflag [#allocation3], 1
    %15 = vsyncpa %s14, 0
    %16 = vsyncpa [#allocation6], 0
    %17 = vsyncpa [#allocation9], 0
    %18 = vsyncpa [#allocation12], 0
    %19 = vsyncpa [#allocation15], 0
    %20 = vsyncpa [#allocation4], 0
    %s21 = scalar_lea.sflag [#allocation4], 1
    %22 = vsyncpa %s21, 0
    loop: start=0, step=1, limit=4
    $region2: #{tpu_custom_call.1} parent=1 // loop_pre_header
      _
    $region3: #{tpu_custom_call.1} parent=1 // loop_header
      %s24 = sphi 0, %s28
      %p25 = scmp.ge.s32.totalorder %s24, 4
      %s34 = sphi 0, %s36
      %s37 = sphi 0, %s34
      %s38 = sphi 0, %s37
      %s54 = sphi 0, %s38
      %s58 = sphi 0, %s58
      %s60 = sphi 0, %s58
      %s61 = sphi 0, %s60
      %s75 = sphi 0, %s61
      %s79 = sphi 0, %s79
      %s81 = sphi 0, %s79
      %s82 = sphi 0, %s81
      %s96 = sphi 0, %s82
      %s100 = sphi 0, %s100
      %s102 = sphi 0, %s100
      %s103 = sphi 0, %s102
      %s117 = sphi 0, %s103
      %s121 = sphi 0, %s121
      %s123 = sphi 0, %s121
      %s124 = sphi 0, %s123
      %s138 = sphi 0, %s124
      %s142 = sphi 0, %s142
      %s144 = sphi 0, %s142
      %s145 = sphi 0, %s144
      %s159 = sphi 0, %s145
      %s163 = sphi 0, %s163
      %s165 = sphi 0, %s163
      %s166 = sphi 0, %s165
      %s180 = sphi 0, %s166
      %s184 = sphi 0, %s184
      %s186 = sphi 0, %s184
      %s187 = sphi 0, %s186
      %s201 = sphi 0, %s187
      %s207 = sphi 0, %s209
      %s210 = sphi 0, %s207
      %s211 = sphi 0, %s210
      %s227 = sphi 0, %s211
    $region4: #{tpu_custom_call.1} parent=1 // loop_header_branch
      %27 = sbr.rel (%p25) target = $region8
    $region5: #{tpu_custom_call.1} parent=1 // loop_body
      %s29 = ssub.s32 %s24, 1
      %s30 = ssub.s32 %s24, 2
      %s31 = sadd.s32 %s24, 1
      %s32 = ssub.s32 %s24, %s31
      %p33 = scmp.eq.s32.totalorder %s32, 0
      %s35 = sadd.s32 %s34, 1
      %s36 = scalar_select %p33, %s34, %s35
      %p39 = pneg %p33
      %p40 = scmp.eq.s32.totalorder %s24, 1
      %p41 = por %p39, %p40
      %p42 = scmp.ne.s32.totalorder %s34, %s37
      %p43 = scmp.eq.s32.totalorder %s24, 0
      %p44 = por %p42, %p43
      %p45 = scmp.ne.s32.totalorder %s34, %s37
      %p46 = scmp.eq.s32.totalorder %s29, 1
      %p47 = por %p45, %p46
      %p48 = scmp.ne.s32.totalorder %s37, %s38
      %p49 = scmp.eq.s32.totalorder %s29, 0
      %p50 = por %p48, %p49
      %p51 = scmp.ne.s32.totalorder %s37, %s38
      %p52 = scmp.eq.s32.totalorder %s30, 1
      %p53 = por %p51, %p52
      %p55 = scmp.ne.s32.totalorder %s38, %s54
      %p56 = scmp.eq.s32.totalorder %s30, 0
      %p57 = por %p55, %p56
      %s59 = sadd.s32 %s58, 1
      %p62 = scmp.eq.s32.totalorder %s24, 1
      %p63 = scmp.ne.s32.totalorder %s58, %s60
      %p64 = scmp.eq.s32.totalorder %s24, 0
      %p65 = por %p63, %p64
      %p66 = scmp.ne.s32.totalorder %s58, %s60
      %p67 = scmp.eq.s32.totalorder %s29, 1
      %p68 = por %p66, %p67
      %p69 = scmp.ne.s32.totalorder %s60, %s61
      %p70 = scmp.eq.s32.totalorder %s29, 0
      %p71 = por %p69, %p70
      %p72 = scmp.ne.s32.totalorder %s60, %s61
      %p73 = scmp.eq.s32.totalorder %s30, 1
      %p74 = por %p72, %p73
      %p76 = scmp.ne.s32.totalorder %s61, %s75
      %p77 = scmp.eq.s32.totalorder %s30, 0
      %p78 = por %p76, %p77
      %s80 = sadd.s32 %s79, 1
      %p83 = scmp.eq.s32.totalorder %s24, 1
      %p84 = scmp.ne.s32.totalorder %s79, %s81
      %p85 = scmp.eq.s32.totalorder %s24, 0
      %p86 = por %p84, %p85
      %p87 = scmp.ne.s32.totalorder %s79, %s81
      %p88 = scmp.eq.s32.totalorder %s29, 1
      %p89 = por %p87, %p88
      %p90 = scmp.ne.s32.totalorder %s81, %s82
      %p91 = scmp.eq.s32.totalorder %s29, 0
      %p92 = por %p90, %p91
      %p93 = scmp.ne.s32.totalorder %s81, %s82
      %p94 = scmp.eq.s32.totalorder %s30, 1
      %p95 = por %p93, %p94
      %p97 = scmp.ne.s32.totalorder %s82, %s96
      %p98 = scmp.eq.s32.totalorder %s30, 0
      %p99 = por %p97, %p98
      %s101 = sadd.s32 %s100, 1
      %p104 = scmp.eq.s32.totalorder %s24, 1
      %p105 = scmp.ne.s32.totalorder %s100, %s102
      %p106 = scmp.eq.s32.totalorder %s24, 0
      %p107 = por %p105, %p106
      %p108 = scmp.ne.s32.totalorder %s100, %s102
      %p109 = scmp.eq.s32.totalorder %s29, 1
      %p110 = por %p108, %p109
      %p111 = scmp.ne.s32.totalorder %s102, %s103
      %p112 = scmp.eq.s32.totalorder %s29, 0
      %p113 = por %p111, %p112
      %p114 = scmp.ne.s32.totalorder %s102, %s103
      %p115 = scmp.eq.s32.totalorder %s30, 1
      %p116 = por %p114, %p115
      %p118 = scmp.ne.s32.totalorder %s103, %s117
      %p119 = scmp.eq.s32.totalorder %s30, 0
      %p120 = por %p118, %p119
      %s122 = sadd.s32 %s121, 1
      %p125 = scmp.eq.s32.totalorder %s24, 1
      %p126 = scmp.ne.s32.totalorder %s121, %s123
      %p127 = scmp.eq.s32.totalorder %s24, 0
      %p128 = por %p126, %p127
      %p129 = scmp.ne.s32.totalorder %s121, %s123
      %p130 = scmp.eq.s32.totalorder %s29, 1
      %p131 = por %p129, %p130
      %p132 = scmp.ne.s32.totalorder %s123, %s124
      %p133 = scmp.eq.s32.totalorder %s29, 0
      %p134 = por %p132, %p133
      %p135 = scmp.ne.s32.totalorder %s123, %s124
      %p136 = scmp.eq.s32.totalorder %s30, 1
      %p137 = por %p135, %p136
      %p139 = scmp.ne.s32.totalorder %s124, %s138
      %p140 = scmp.eq.s32.totalorder %s30, 0
      %p141 = por %p139, %p140
      %s143 = sadd.s32 %s142, 1
      %p146 = scmp.eq.s32.totalorder %s24, 1
      %p147 = scmp.ne.s32.totalorder %s142, %s144
      %p148 = scmp.eq.s32.totalorder %s24, 0
      %p149 = por %p147, %p148
      %p150 = scmp.ne.s32.totalorder %s142, %s144
      %p151 = scmp.eq.s32.totalorder %s29, 1
      %p152 = por %p150, %p151
      %p153 = scmp.ne.s32.totalorder %s144, %s145
      %p154 = scmp.eq.s32.totalorder %s29, 0
      %p155 = por %p153, %p154
      %p156 = scmp.ne.s32.totalorder %s144, %s145
      %p157 = scmp.eq.s32.totalorder %s30, 1
      %p158 = por %p156, %p157
      %p160 = scmp.ne.s32.totalorder %s145, %s159
      %p161 = scmp.eq.s32.totalorder %s30, 0
      %p162 = por %p160, %p161
      %s164 = sadd.s32 %s163, 1
      %p167 = scmp.eq.s32.totalorder %s24, 1
      %p168 = scmp.ne.s32.totalorder %s163, %s165
      %p169 = scmp.eq.s32.totalorder %s24, 0
      %p170 = por %p168, %p169
      %p171 = scmp.ne.s32.totalorder %s163, %s165
      %p172 = scmp.eq.s32.totalorder %s29, 1
      %p173 = por %p171, %p172
      %p174 = scmp.ne.s32.totalorder %s165, %s166
      %p175 = scmp.eq.s32.totalorder %s29, 0
      %p176 = por %p174, %p175
      %p177 = scmp.ne.s32.totalorder %s165, %s166
      %p178 = scmp.eq.s32.totalorder %s30, 1
      %p179 = por %p177, %p178
      %p181 = scmp.ne.s32.totalorder %s166, %s180
      %p182 = scmp.eq.s32.totalorder %s30, 0
      %p183 = por %p181, %p182
      %s185 = sadd.s32 %s184, 1
      %p188 = scmp.eq.s32.totalorder %s24, 1
      %p189 = scmp.ne.s32.totalorder %s184, %s186
      %p190 = scmp.eq.s32.totalorder %s24, 0
      %p191 = por %p189, %p190
      %p192 = scmp.ne.s32.totalorder %s184, %s186
      %p193 = scmp.eq.s32.totalorder %s29, 1
      %p194 = por %p192, %p193
      %p195 = scmp.ne.s32.totalorder %s186, %s187
      %p196 = scmp.eq.s32.totalorder %s29, 0
      %p197 = por %p195, %p196
      %p198 = scmp.ne.s32.totalorder %s186, %s187
      %p199 = scmp.eq.s32.totalorder %s30, 1
      %p200 = por %p198, %p199
      %p202 = scmp.ne.s32.totalorder %s187, %s201
      %p203 = scmp.eq.s32.totalorder %s30, 0
      %p204 = por %p202, %p203
      %s205 = ssub.s32 %s24, %s31
      %p206 = scmp.eq.s32.totalorder %s205, 0
      %s208 = sadd.s32 %s207, 1
      %s209 = scalar_select %p206, %s207, %s208
      %p212 = pneg %p206
      %p213 = scmp.eq.s32.totalorder %s24, 1
      %p214 = por %p212, %p213
      %p215 = scmp.ne.s32.totalorder %s207, %s210
      %p216 = scmp.eq.s32.totalorder %s24, 0
      %p217 = por %p215, %p216
      %p218 = scmp.ne.s32.totalorder %s207, %s210
      %p219 = scmp.eq.s32.totalorder %s29, 1
      %p220 = por %p218, %p219
      %p221 = scmp.ne.s32.totalorder %s210, %s211
      %p222 = scmp.eq.s32.totalorder %s29, 0
      %p223 = por %p221, %p222
      %p224 = scmp.ne.s32.totalorder %s210, %s211
      %p225 = scmp.eq.s32.totalorder %s30, 1
      %p226 = por %p224, %p225
      %p228 = scmp.ne.s32.totalorder %s211, %s227
      %p229 = scmp.eq.s32.totalorder %s30, 0
      %p230 = por %p228, %p229
      %p231 = scmp.le.s32.totalorder 1, %s24
      %p232 = scmp.lt.s32.totalorder %s24, 3
      %p233 = pnand %p231, %p232
      %p234 = pneg %p233
      // Predicated region
      $region9: #{tpu_custom_call.1} parent=5 // pred_check
        _
      $region10: #{tpu_custom_call.1} parent=5 // pred_check_branch
        %236 = sbr.rel (%p233) target = $region12
      $region11: #{tpu_custom_call.1} parent=5 // pred_region
        %s237 = ssub.s32 %s24, 1
        // Predicated region
        $region13: #{tpu_custom_call.1} parent=11 // pred_check
          %p238 = pneg %p71
        $region14: #{tpu_custom_call.1} parent=11 // pred_check_branch
          %240 = sbr.rel (%p238) target = $region16
        $region15: #{tpu_custom_call.1} parent=11 // pred_region
          %s242 = ssub.s32 512, 512
          %243 = vsyncadd [#allocation6], %s242
          %s244 = sshll.u32 [#allocation5], 4
          %s245 = int_to_ptr.vmem [resolvable:$true] %s244
          %250 = dma.hbm_to_vmem [thread:$0]  %s1, 512, %s245, [#allocation6], 256, 256, 16
        $region16: #{tpu_custom_call.1} parent=11 // pred_fallthru
          _
        // Predicated region
        $region17: #{tpu_custom_call.1} parent=11 // pred_check
          %p251 = pneg %p92
        $region18: #{tpu_custom_call.1} parent=11 // pred_check_branch
          %253 = sbr.rel (%p251) target = $region20
        $region19: #{tpu_custom_call.1} parent=11 // pred_region
          %s255 = ssub.s32 128, 128
          %256 = vsyncadd [#allocation6], %s255
          %s258 = sshll.u32 [#allocation7], 4
          %s259 = int_to_ptr.vmem [resolvable:$true] %s258
          %261 = dma.hbm_to_vmem [thread:$0]  %s2, 128, %s259, [#allocation6]
        $region20: #{tpu_custom_call.1} parent=11 // pred_fallthru
          _
        // Predicated region
        $region21: #{tpu_custom_call.1} parent=11 // pred_check
          %p262 = pneg %p113
        $region22: #{tpu_custom_call.1} parent=11 // pred_check_branch
          %264 = sbr.rel (%p262) target = $region24
        $region23: #{tpu_custom_call.1} parent=11 // pred_region
          %s266 = ssub.s32 128, 128
          %267 = vsyncadd [#allocation9], %s266
          %s269 = sshll.u32 [#allocation8], 4
          %s270 = int_to_ptr.vmem [resolvable:$true] %s269
          %272 = dma.hbm_to_vmem [thread:$0]  %s3, 128, %s270, [#allocation9]
        $region24: #{tpu_custom_call.1} parent=11 // pred_fallthru
          _
        // Predicated region
        $region25: #{tpu_custom_call.1} parent=11 // pred_check
          %p273 = pneg %p134
        $region26: #{tpu_custom_call.1} parent=11 // pred_check_branch
          %275 = sbr.rel (%p273) target = $region28
        $region27: #{tpu_custom_call.1} parent=11 // pred_region
          %s277 = ssub.s32 1152, 1152
          %278 = vsyncadd [#allocation9], %s277
          %s279 = sshll.u32 [#allocation10], 4
          %s280 = int_to_ptr.vmem [resolvable:$true] %s279
          %285 = dma.hbm_to_vmem [thread:$0]  %s4, 1152, %s280, [#allocation9], 128, 128, 8
        $region28: #{tpu_custom_call.1} parent=11 // pred_fallthru
          _
        // Predicated region
        $region29: #{tpu_custom_call.1} parent=11 // pred_check
          %p286 = pneg %p155
        $region30: #{tpu_custom_call.1} parent=11 // pred_check_branch
          %288 = sbr.rel (%p286) target = $region32
        $region31: #{tpu_custom_call.1} parent=11 // pred_region
          %s290 = ssub.s32 128, 128
          %291 = vsyncadd [#allocation12], %s290
          %s293 = sshll.u32 [#allocation11], 4
          %s294 = int_to_ptr.vmem [resolvable:$true] %s293
          %296 = dma.hbm_to_vmem [thread:$0]  %s5, 128, %s294, [#allocation12]
        $region32: #{tpu_custom_call.1} parent=11 // pred_fallthru
          _
        // Predicated region
        $region33: #{tpu_custom_call.1} parent=11 // pred_check
          %p297 = pneg %p176
        $region34: #{tpu_custom_call.1} parent=11 // pred_check_branch
          %299 = sbr.rel (%p297) target = $region36
        $region35: #{tpu_custom_call.1} parent=11 // pred_region
          %s301 = ssub.s32 256, 256
          %302 = vsyncadd [#allocation12], %s301
          %s303 = sshll.u32 [#allocation13], 4
          %s304 = int_to_ptr.vmem [resolvable:$true] %s303
          %309 = dma.hbm_to_vmem [thread:$0]  %s6, 256, %s304, [#allocation12], 128, 128, 8
        $region36: #{tpu_custom_call.1} parent=11 // pred_fallthru
          _
        // Predicated region
        $region37: #{tpu_custom_call.1} parent=11 // pred_check
          %p310 = pneg %p197
        $region38: #{tpu_custom_call.1} parent=11 // pred_check_branch
          %312 = sbr.rel (%p310) target = $region40
        $region39: #{tpu_custom_call.1} parent=11 // pred_region
          %s314 = ssub.s32 256, 256
          %315 = vsyncadd [#allocation15], %s314
          %s316 = sshll.u32 [#allocation14], 4
          %s317 = int_to_ptr.vmem [resolvable:$true] %s316
          %322 = dma.hbm_to_vmem [thread:$0]  %s7, 256, %s317, [#allocation15], 128, 128, 8
        $region40: #{tpu_custom_call.1} parent=11 // pred_fallthru
          _
      $region12: #{tpu_custom_call.1} parent=5 // pred_fallthru
        _
      %p323 = scmp.lt.s32.totalorder %s24, 2
      // Predicated region
      $region41: #{tpu_custom_call.1} parent=5 // pred_check
        %p324 = pneg %p323
      $region42: #{tpu_custom_call.1} parent=5 // pred_check_branch
        %326 = sbr.rel (%p324) target = $region44
      $region43: #{tpu_custom_call.1} parent=5 // pred_region
        // Predicated region
        $region45: #{tpu_custom_call.1} parent=43 // pred_check
          %p327 = pneg %p44
        $region46: #{tpu_custom_call.1} parent=43 // pred_check_branch
          %329 = sbr.rel (%p327) target = $region48
        $region47: #{tpu_custom_call.1} parent=43 // pred_region
          %s330 = sand.u32 %s34, 1
          %s331 = scalar_lea.sflag [#allocation3], %s330
          %s332 = sand.u32 %s34, 1
          %s333 = smul.addr %s332, 32
          %s334 = scalar_lea.vmem [#allocation2], %s333
          %s335 = smul.u32 2, %s24
          %s337 = ssub.s32 512, 512
          %338 = vsyncadd %s331, %s337
          %s339 = smul.addr %s335, 128
          %s340 = scalar_lea.hbm %s0, %s339
          %s341 = sshll.u32 %s334, 4
          %s342 = int_to_ptr.vmem [resolvable:$true] %s341
          %347 = dma.hbm_to_vmem [thread:$0]  %s340, 512, %s342, %s331, 512, 256, 16
        $region48: #{tpu_custom_call.1} parent=43 // pred_fallthru
          _
      $region44: #{tpu_custom_call.1} parent=5 // pred_fallthru
        _
      %p348 = scmp.le.s32.totalorder 1, %s24
      %p349 = scmp.lt.s32.totalorder %s24, 3
      %p350 = pnand %p348, %p349
      %p351 = pneg %p350
      // Predicated region
      $region49: #{tpu_custom_call.1} parent=5 // pred_check
        _
      $region50: #{tpu_custom_call.1} parent=5 // pred_check_branch
        %353 = sbr.rel (%p350) target = $region52
      $region51: #{tpu_custom_call.1} parent=5 // pred_region
        %s354 = ssub.s32 %s24, 1
        %s355 = sand.u32 %s37, 1
        %s356 = scalar_lea.sflag [#allocation3], %s355
        %s357 = sand.u32 %s37, 1
        %s358 = smul.addr %s357, 32
        %s359 = scalar_lea.vmem [#allocation2], %s358
        // Predicated region
        $region53: #{tpu_custom_call.1} parent=51 // pred_check
          %p360 = pneg %p50
        $region54: #{tpu_custom_call.1} parent=51 // pred_check_branch
          %362 = sbr.rel (%p360) target = $region56
        $region55: #{tpu_custom_call.1} parent=51 // pred_region
          %363 = dma.done %s356, 512
        $region56: #{tpu_custom_call.1} parent=51 // pred_fallthru
          _
        // Predicated region
        $region57: #{tpu_custom_call.1} parent=51 // pred_check
          %p364 = pneg %p71
        $region58: #{tpu_custom_call.1} parent=51 // pred_check_branch
          %366 = sbr.rel (%p364) target = $region60
        $region59: #{tpu_custom_call.1} parent=51 // pred_region
          %367 = dma.done [#allocation6], 512
        $region60: #{tpu_custom_call.1} parent=51 // pred_fallthru
          _
        // Predicated region
        $region61: #{tpu_custom_call.1} parent=51 // pred_check
          %p368 = pneg %p92
        $region62: #{tpu_custom_call.1} parent=51 // pred_check_branch
          %370 = sbr.rel (%p368) target = $region64
        $region63: #{tpu_custom_call.1} parent=51 // pred_region
          %371 = dma.done [#allocation6], 128
        $region64: #{tpu_custom_call.1} parent=51 // pred_fallthru
          _
        // Predicated region
        $region65: #{tpu_custom_call.1} parent=51 // pred_check
          %p372 = pneg %p113
        $region66: #{tpu_custom_call.1} parent=51 // pred_check_branch
          %374 = sbr.rel (%p372) target = $region68
        $region67: #{tpu_custom_call.1} parent=51 // pred_region
          %375 = dma.done [#allocation9], 128
        $region68: #{tpu_custom_call.1} parent=51 // pred_fallthru
          _
        // Predicated region
        $region69: #{tpu_custom_call.1} parent=51 // pred_check
          %p376 = pneg %p134
        $region70: #{tpu_custom_call.1} parent=51 // pred_check_branch
          %378 = sbr.rel (%p376) target = $region72
        $region71: #{tpu_custom_call.1} parent=51 // pred_region
          %379 = dma.done [#allocation9], 1152
        $region72: #{tpu_custom_call.1} parent=51 // pred_fallthru
          _
        // Predicated region
        $region73: #{tpu_custom_call.1} parent=51 // pred_check
          %p380 = pneg %p155
        $region74: #{tpu_custom_call.1} parent=51 // pred_check_branch
          %382 = sbr.rel (%p380) target = $region76
        $region75: #{tpu_custom_call.1} parent=51 // pred_region
          %383 = dma.done [#allocation12], 128
        $region76: #{tpu_custom_call.1} parent=51 // pred_fallthru
          _
        // Predicated region
        $region77: #{tpu_custom_call.1} parent=51 // pred_check
          %p384 = pneg %p176
        $region78: #{tpu_custom_call.1} parent=51 // pred_check_branch
          %386 = sbr.rel (%p384) target = $region80
        $region79: #{tpu_custom_call.1} parent=51 // pred_region
          %387 = dma.done [#allocation12], 256
        $region80: #{tpu_custom_call.1} parent=51 // pred_fallthru
          _
        // Predicated region
        $region81: #{tpu_custom_call.1} parent=51 // pred_check
          %p388 = pneg %p197
        $region82: #{tpu_custom_call.1} parent=51 // pred_check_branch
          %390 = sbr.rel (%p388) target = $region84
        $region83: #{tpu_custom_call.1} parent=51 // pred_region
          %391 = dma.done [#allocation15], 256
        $region84: #{tpu_custom_call.1} parent=51 // pred_fallthru
          _
        %s392 = sand.u32 %s37, 1
        %s393 = scalar_lea.sflag [#allocation3], %s392
        %s394 = sand.u32 %s37, 1
        %s395 = smul.addr %s394, 32
        %s396 = scalar_lea.vmem [#allocation2], %s395
        %p397 = pneg %p50
        %p398 = pneg %p47
        %p399 = pneg %p71
        %p400 = pneg %p68
        %p401 = pneg %p92
        %p402 = pneg %p89
        %p403 = pneg %p113
        %p404 = pneg %p110
        %p405 = pneg %p134
        %p406 = pneg %p131
        %p407 = pneg %p155
        %p408 = pneg %p152
        %p409 = pneg %p176
        %p410 = pneg %p173
        %p411 = pneg %p197
        %p412 = pneg %p194
        %p413 = pneg %p223
        %p414 = pneg %p220
        %s415 = sand.u32 %s210, 1
        %s416 = scalar_lea.sflag [#allocation4], %s415
        %s417 = sand.u32 %s210, 1
        %s418 = smul.addr %s417, 32
        %s419 = scalar_lea.vmem [#allocation16], %s418
        %s420 = smul.u32 2, %s29
        %s421 = smul.u32 2, %s29
        %v422 = vld [vmem:[%s359] sm:$0xff]
        %v423 = vld [vmem:[%s359 + $0x8] sm:$0xff]
        %v424 = vld [vmem:[%s359 + $0x10] sm:$0xff]
        %v425 = vld [vmem:[%s359 + $0x18] sm:$0xff]
        %v426 = vld [vmem:[#allocation7] sm:$0xff]
        %v427 = vld [vmem:[#allocation8] sm:$0xff]
        %429 = vset.pattern.permute.xlu0 0
        %430 = vperm.xlu0 %429, %v427
        %v431 = vpop.permute.xlu0 %430
        %vm433 = vcmask 130048
        %v435 = vsel %vm433, %v426, 0
        %437 = vmatprep.subr.mxu0 %v423
        %438 = vmatpush1.msra.mxu0 %v422
        %439 = vmatprep.subr.mxu0 %v425
        %440 = vmatpush1.msra.mxu0 %v424
        %441 = vmatprep.subr.mxu0 0.0
        %442 = vmatpush1.msra.mxu0 0.0
        %443 = vmatprep.subr.mxu0 0.0
        %444 = vmatpush1.msra.mxu0 0.0
        %445 = vmatprep.subr.mxu0 0.0
        %446 = vmatpush1.msra.mxu0 0.0
        %447 = vmatprep.subr.mxu0 0.0
        %448 = vmatpush1.msra.mxu0 0.0
        %449 = vmatprep.subr.mxu0 0.0
        %450 = vmatpush1.msra.mxu0 0.0
        %451 = vmatprep.subr.mxu0 0.0
        %452 = vmatpush1.msra.mxu0 0.0
        %453 = vmatprep.subr.mxu0 0.0
        %454 = vmatpush1.msra.mxu0 0.0
        %455 = vmatprep.subr.mxu0 0.0
        %456 = vmatpush1.msra.mxu0 0.0
        %457 = vmatprep.subr.mxu0 0.0
        %458 = vmatpush1.msra.mxu0 0.0
        %459 = vmatprep.subr.mxu0 0.0
        %460 = vmatpush1.msra.mxu0 0.0
        %461 = vmatprep.subr.mxu0 0.0
        %462 = vmatpush1.msra.mxu0 0.0
        %463 = vmatprep.subr.mxu0 0.0
        %464 = vmatpush1.msra.mxu0 0.0
        %465 = vmatprep.subr.mxu0 0.0
        %466 = vmatpush1.msra.mxu0 0.0
        %467 = vmatprep.subr.mxu0 0.0
        %468 = vmatpush1.msra.mxu0 0.0
        %469 = vmatprep.subr.mxu0 0.0
        %470 = vmatpush1.msra.mxu0 0.0
        %471 = vmatprep.subr.mxu0 0.0
        %472 = vmatpush1.msra.mxu0 0.0
        %473 = vmatprep.subr.mxu0 0.0
        %474 = vmatpush1.msra.mxu0 0.0
        %475 = vmatprep.subr.mxu0 0.0
        %476 = vmatpush1.msra.mxu0 0.0
        %477 = vmatprep.subr.mxu0 0.0
        %478 = vmatpush1.msra.mxu0 0.0
        %479 = vmatprep.subr.mxu0 0.0
        %480 = vmatpush1.msra.mxu0 0.0
        %481 = vmatprep.subr.mxu0 0.0
        %482 = vmatpush1.msra.mxu0 0.0
        %483 = vmatprep.subr.mxu0 0.0
        %484 = vmatpush1.msra.mxu0 0.0
        %485 = vmatprep.subr.mxu0 0.0
        %486 = vmatpush1.msra.mxu0 0.0
        %487 = vmatprep.subr.mxu0 0.0
        %488 = vmatpush1.msra.mxu0 0.0
        %489 = vmatprep.subr.mxu0 0.0
        %490 = vmatpush1.msra.mxu0 0.0
        %491 = vmatprep.subr.mxu0 0.0
        %492 = vmatpush1.msra.mxu0 0.0
        %493 = vmatprep.subr.mxu0 0.0
        %494 = vmatpush1.msra.mxu0 0.0
        %495 = vmatprep.subr.mxu0 0.0
        %496 = vmatpush1.msra.mxu0 0.0
        %497 = vmatprep.subr.mxu0 0.0
        %498 = vmatpush1.msra.mxu0 0.0
        %499 = vmatprep.subr.mxu0 0.0
        %500 = vmatpush1.msra.mxu0 0.0
        %501 = vmatprep.mubr.f32.mxu0 0.0
        %502 = vmatmul.mubr.f32.gmra.mrb[0].mxu0 %v435
        %v503 = vpop.f32.mrb[0].mxu0
        %v504 = vadd.f32 %v431, %v503
        %v505 = vpop.f32.mrb[0].mxu0
        %v506 = vadd.f32 %v431, %v505
        %507 = vdwg.mxu0
        %v508 = vmax.f32 %v504, 0.0
        %v509 = vmax.f32 %v506, 0.0
        %510 = vrot.lane.b32.xlu0 %v508, 17
        %v511 = vpop.permute.xlu0 %510
        %512 = vrot.lane.b32.xlu0 %v509, 17
        %v513 = vpop.permute.xlu0 %512
        %v514 = vlaneseq
        %v515 = vand.u32 %v514, 127
        %vm516 = vcmp.lt.s32.totalorder %v515, 17
        %v517 = vsel %vm516, %v511, %v513
        %v518 = vsel %vm516, %v513, %v511
        %v519 = vld [vmem:[#allocation5] ss:$8 sm:$0x3]
        %v521 = vlaneseq
        %v522 = vshrl.u32 %v521, 7
        %v523 = vsub.s32 0, %v522
        %v524 = vrot.slane %v519, %v523
        %v525 = vlaneseq
        %v526 = vshrl.u32 %v525, 7
        %v527 = vsub.s32 1, %v526
        %v528 = vrot.slane %v519, %v527
        %v531 = vmul.f32 %v518, %v524
        %v532 = vmul.f32 %v517, %v528
        %v533 = vld [vmem:[#allocation10] sm:$0xff]
        %534 = vrot.lane.b32.xlu0 %v508, 16
        %v535 = vpop.permute.xlu0 %534
        %536 = vrot.lane.b32.xlu0 %v509, 16
        %v537 = vpop.permute.xlu0 %536
        %vm538 = vcmp.lt.s32.totalorder %v515, 16
        %v539 = vsel %vm538, %v535, %v537
        %v540 = vsel %vm538, %v537, %v535
        %s541 = scalar_lea.vmem [#allocation5], 1
        %v542 = vld [vmem:[%s541] ss:$8 sm:$0x3]
        %v544 = vlaneseq
        %v545 = vshrl.u32 %v544, 7
        %v546 = vsub.s32 0, %v545
        %v547 = vrot.slane %v542, %v546
        %v548 = vlaneseq
        %v549 = vshrl.u32 %v548, 7
        %v550 = vsub.s32 1, %v549
        %v551 = vrot.slane %v542, %v550
        %v554 = vmul.f32 %v540, %v547
        %v555 = vmul.f32 %v539, %v551
        %s556 = scalar_lea.vmem [#allocation10], 8
        %v557 = vld [vmem:[%s556] sm:$0xff]
        %vm558 = vcmask 64512
        %v560 = vsel %vm558, %v557, 0
        %562 = vmatprep.subr.mxu0 %v555
        %563 = vmatpush1.msra.mxu0 %v554
        %564 = vmatprep.subr.mxu0 0.0
        %565 = vmatpush1.msra.mxu0 0.0
        %566 = vmatprep.subr.mxu0 0.0
        %567 = vmatpush1.msra.mxu0 0.0
        %568 = vmatprep.subr.mxu0 0.0
        %569 = vmatpush1.msra.mxu0 0.0
        %570 = vmatprep.subr.mxu0 0.0
        %571 = vmatpush1.msra.mxu0 0.0
        %572 = vmatprep.subr.mxu0 0.0
        %573 = vmatpush1.msra.mxu0 0.0
        %574 = vmatprep.subr.mxu0 0.0
        %575 = vmatpush1.msra.mxu0 0.0
        %576 = vmatprep.subr.mxu0 0.0
        %577 = vmatpush1.msra.mxu0 0.0
        %578 = vmatprep.subr.mxu0 0.0
        %579 = vmatpush1.msra.mxu0 0.0
        %580 = vmatprep.subr.mxu0 0.0
        %581 = vmatpush1.msra.mxu0 0.0
        %582 = vmatprep.subr.mxu0 0.0
        %583 = vmatpush1.msra.mxu0 0.0
        %584 = vmatprep.subr.mxu0 0.0
        %585 = vmatpush1.msra.mxu0 0.0
        %586 = vmatprep.subr.mxu0 0.0
        %587 = vmatpush1.msra.mxu0 0.0
        %588 = vmatprep.subr.mxu0 0.0
        %589 = vmatpush1.msra.mxu0 0.0
        %590 = vmatprep.subr.mxu0 0.0
        %591 = vmatpush1.msra.mxu0 0.0
        %592 = vmatprep.subr.mxu0 0.0
        %593 = vmatpush1.msra.mxu0 0.0
        %594 = vmatprep.subr.mxu0 0.0
        %595 = vmatpush1.msra.mxu0 0.0
        %596 = vmatprep.subr.mxu0 0.0
        %597 = vmatpush1.msra.mxu0 0.0
        %598 = vmatprep.subr.mxu0 0.0
        %599 = vmatpush1.msra.mxu0 0.0
        %600 = vmatprep.subr.mxu0 0.0
        %601 = vmatpush1.msra.mxu0 0.0
        %602 = vmatprep.subr.mxu0 0.0
        %603 = vmatpush1.msra.mxu0 0.0
        %604 = vmatprep.subr.mxu0 0.0
        %605 = vmatpush1.msra.mxu0 0.0
        %606 = vmatprep.subr.mxu0 0.0
        %607 = vmatpush1.msra.mxu0 0.0
        %608 = vmatprep.subr.mxu0 0.0
        %609 = vmatpush1.msra.mxu0 0.0
        %610 = vmatprep.subr.mxu0 0.0
        %611 = vmatpush1.msra.mxu0 0.0
        %612 = vmatprep.subr.mxu0 0.0
        %613 = vmatpush1.msra.mxu0 0.0
        %614 = vmatprep.subr.mxu0 0.0
        %615 = vmatpush1.msra.mxu0 0.0
        %616 = vmatprep.subr.mxu0 0.0
        %617 = vmatpush1.msra.mxu0 0.0
        %618 = vmatprep.subr.mxu0 0.0
        %619 = vmatpush1.msra.mxu0 0.0
        %620 = vmatprep.subr.mxu0 0.0
        %621 = vmatpush1.msra.mxu0 0.0
        %622 = vmatprep.subr.mxu0 0.0
        %623 = vmatpush1.msra.mxu0 0.0
        %624 = vmatprep.subr.mxu0 0.0
        %625 = vmatpush1.msra.mxu0 0.0
        %626 = vmatprep.mubr.f32.mxu0 0.0
        %627 = vmatmul.mubr.f32.gmra.mrb[0].mxu0 %v560
        %v628 = vpop.f32.mrb[0].mxu0
        %v629 = vadd.f32 0.0, %v628
        %v630 = vpop.f32.mrb[0].mxu0
        %v631 = vadd.f32 0.0, %v630
        %632 = vdwg.mxu0
        %v634 = vsel %vm558, %v533, 0
        %636 = vmatprep.subr.mxu0 %v532
        %637 = vmatpush1.msra.mxu0 %v531
        %638 = vmatprep.subr.mxu0 0.0
        %639 = vmatpush1.msra.mxu0 0.0
        %640 = vmatprep.subr.mxu0 0.0
        %641 = vmatpush1.msra.mxu0 0.0
        %642 = vmatprep.subr.mxu0 0.0
        %643 = vmatpush1.msra.mxu0 0.0
        %644 = vmatprep.subr.mxu0 0.0
        %645 = vmatpush1.msra.mxu0 0.0
        %646 = vmatprep.subr.mxu0 0.0
        %647 = vmatpush1.msra.mxu0 0.0
        %648 = vmatprep.subr.mxu0 0.0
        %649 = vmatpush1.msra.mxu0 0.0
        %650 = vmatprep.subr.mxu0 0.0
        %651 = vmatpush1.msra.mxu0 0.0
        %652 = vmatprep.subr.mxu0 0.0
        %653 = vmatpush1.msra.mxu0 0.0
        %654 = vmatprep.subr.mxu0 0.0
        %655 = vmatpush1.msra.mxu0 0.0
        %656 = vmatprep.subr.mxu0 0.0
        %657 = vmatpush1.msra.mxu0 0.0
        %658 = vmatprep.subr.mxu0 0.0
        %659 = vmatpush1.msra.mxu0 0.0
        %660 = vmatprep.subr.mxu0 0.0
        %661 = vmatpush1.msra.mxu0 0.0
        %662 = vmatprep.subr.mxu0 0.0
        %663 = vmatpush1.msra.mxu0 0.0
        %664 = vmatprep.subr.mxu0 0.0
        %665 = vmatpush1.msra.mxu0 0.0
        %666 = vmatprep.subr.mxu0 0.0
        %667 = vmatpush1.msra.mxu0 0.0
        %668 = vmatprep.subr.mxu0 0.0
        %669 = vmatpush1.msra.mxu0 0.0
        %670 = vmatprep.subr.mxu0 0.0
        %671 = vmatpush1.msra.mxu0 0.0
        %672 = vmatprep.subr.mxu0 0.0
        %673 = vmatpush1.msra.mxu0 0.0
        %674 = vmatprep.subr.mxu0 0.0
        %675 = vmatpush1.msra.mxu0 0.0
        %676 = vmatprep.subr.mxu0 0.0
        %677 = vmatpush1.msra.mxu0 0.0
        %678 = vmatprep.subr.mxu0 0.0
        %679 = vmatpush1.msra.mxu0 0.0
        %680 = vmatprep.subr.mxu0 0.0
        %681 = vmatpush1.msra.mxu0 0.0
        %682 = vmatprep.subr.mxu0 0.0
        %683 = vmatpush1.msra.mxu0 0.0
        %684 = vmatprep.subr.mxu0 0.0
        %685 = vmatpush1.msra.mxu0 0.0
        %686 = vmatprep.subr.mxu0 0.0
        %687 = vmatpush1.msra.mxu0 0.0
        %688 = vmatprep.subr.mxu0 0.0
        %689 = vmatpush1.msra.mxu0 0.0
        %690 = vmatprep.subr.mxu0 0.0
        %691 = vmatpush1.msra.mxu0 0.0
        %692 = vmatprep.subr.mxu0 0.0
        %693 = vmatpush1.msra.mxu0 0.0
        %694 = vmatprep.subr.mxu0 0.0
        %695 = vmatpush1.msra.mxu0 0.0
        %696 = vmatprep.subr.mxu0 0.0
        %697 = vmatpush1.msra.mxu0 0.0
        %698 = vmatprep.subr.mxu0 0.0
        %699 = vmatpush1.msra.mxu0 0.0
        %700 = vmatprep.mubr.f32.mxu0 0.0
        %701 = vmatmul.mubr.f32.gmra.mrb[0].mxu0 %v634
        %v702 = vpop.f32.mrb[0].mxu0
        %v703 = vadd.f32 %v629, %v702
        %v704 = vpop.f32.mrb[0].mxu0
        %v705 = vadd.f32 %v631, %v704
        %706 = vdwg.mxu0
        %707 = vrot.lane.b32.xlu0 %v508, 15
        %v708 = vpop.permute.xlu0 %707
        %709 = vrot.lane.b32.xlu0 %v509, 15
        %v710 = vpop.permute.xlu0 %709
        %vm711 = vcmp.lt.s32.totalorder %v515, 15
        %v712 = vsel %vm711, %v708, %v710
        %v713 = vsel %vm711, %v710, %v708
        %s714 = scalar_lea.vmem [#allocation5], 2
        %v715 = vld [vmem:[%s714] ss:$8 sm:$0x3]
        %v717 = vlaneseq
        %v718 = vshrl.u32 %v717, 7
        %v719 = vsub.s32 0, %v718
        %v720 = vrot.slane %v715, %v719
        %v721 = vlaneseq
        %v722 = vshrl.u32 %v721, 7
        %v723 = vsub.s32 1, %v722
        %v724 = vrot.slane %v715, %v723
        %v727 = vmul.f32 %v713, %v720
        %v728 = vmul.f32 %v712, %v724
        %s729 = scalar_lea.vmem [#allocation10], 16
        %v730 = vld [vmem:[%s729] sm:$0xff]
        %v732 = vsel %vm558, %v730, 0
        %734 = vmatprep.subr.mxu0 %v728
        %735 = vmatpush1.msra.mxu0 %v727
        %736 = vmatprep.subr.mxu0 0.0
        %737 = vmatpush1.msra.mxu0 0.0
        %738 = vmatprep.subr.mxu0 0.0
        %739 = vmatpush1.msra.mxu0 0.0
        %740 = vmatprep.subr.mxu0 0.0
        %741 = vmatpush1.msra.mxu0 0.0
        %742 = vmatprep.subr.mxu0 0.0
        %743 = vmatpush1.msra.mxu0 0.0
        %744 = vmatprep.subr.mxu0 0.0
        %745 = vmatpush1.msra.mxu0 0.0
        %746 = vmatprep.subr.mxu0 0.0
        %747 = vmatpush1.msra.mxu0 0.0
        %748 = vmatprep.subr.mxu0 0.0
        %749 = vmatpush1.msra.mxu0 0.0
        %750 = vmatprep.subr.mxu0 0.0
        %751 = vmatpush1.msra.mxu0 0.0
        %752 = vmatprep.subr.mxu0 0.0
        %753 = vmatpush1.msra.mxu0 0.0
        %754 = vmatprep.subr.mxu0 0.0
        %755 = vmatpush1.msra.mxu0 0.0
        %756 = vmatprep.subr.mxu0 0.0
        %757 = vmatpush1.msra.mxu0 0.0
        %758 = vmatprep.subr.mxu0 0.0
        %759 = vmatpush1.msra.mxu0 0.0
        %760 = vmatprep.subr.mxu0 0.0
        %761 = vmatpush1.msra.mxu0 0.0
        %762 = vmatprep.subr.mxu0 0.0
        %763 = vmatpush1.msra.mxu0 0.0
        %764 = vmatprep.subr.mxu0 0.0
        %765 = vmatpush1.msra.mxu0 0.0
        %766 = vmatprep.subr.mxu0 0.0
        %767 = vmatpush1.msra.mxu0 0.0
        %768 = vmatprep.subr.mxu0 0.0
        %769 = vmatpush1.msra.mxu0 0.0
        %770 = vmatprep.subr.mxu0 0.0
        %771 = vmatpush1.msra.mxu0 0.0
        %772 = vmatprep.subr.mxu0 0.0
        %773 = vmatpush1.msra.mxu0 0.0
        %774 = vmatprep.subr.mxu0 0.0
        %775 = vmatpush1.msra.mxu0 0.0
        %776 = vmatprep.subr.mxu0 0.0
        %777 = vmatpush1.msra.mxu0 0.0
        %778 = vmatprep.subr.mxu0 0.0
        %779 = vmatpush1.msra.mxu0 0.0
        %780 = vmatprep.subr.mxu0 0.0
        %781 = vmatpush1.msra.mxu0 0.0
        %782 = vmatprep.subr.mxu0 0.0
        %783 = vmatpush1.msra.mxu0 0.0
        %784 = vmatprep.subr.mxu0 0.0
        %785 = vmatpush1.msra.mxu0 0.0
        %786 = vmatprep.subr.mxu0 0.0
        %787 = vmatpush1.msra.mxu0 0.0
        %788 = vmatprep.subr.mxu0 0.0
        %789 = vmatpush1.msra.mxu0 0.0
        %790 = vmatprep.subr.mxu0 0.0
        %791 = vmatpush1.msra.mxu0 0.0
        %792 = vmatprep.subr.mxu0 0.0
        %793 = vmatpush1.msra.mxu0 0.0
        %794 = vmatprep.subr.mxu0 0.0
        %795 = vmatpush1.msra.mxu0 0.0
        %796 = vmatprep.subr.mxu0 0.0
        %797 = vmatpush1.msra.mxu0 0.0
        %798 = vmatprep.mubr.f32.mxu0 0.0
        %799 = vmatmul.mubr.f32.gmra.mrb[0].mxu0 %v732
        %v800 = vpop.f32.mrb[0].mxu0
        %v801 = vadd.f32 0.0, %v800
        %v802 = vpop.f32.mrb[0].mxu0
        %v803 = vadd.f32 0.0, %v802
        %804 = vdwg.mxu0
        %v805 = vadd.f32 %v703, %v801
        %v806 = vadd.f32 %v705, %v803
        %807 = vrot.lane.b32.xlu0 %v508, 1
        %v808 = vpop.permute.xlu0 %807
        %809 = vrot.lane.b32.xlu0 %v509, 1
        %v810 = vpop.permute.xlu0 %809
        %vm811 = vcmp.lt.s32.totalorder %v515, 1
        %v812 = vsel %vm811, %v808, %v810
        %v813 = vsel %vm811, %v810, %v808
        %s814 = scalar_lea.vmem [#allocation5], 3
        %v815 = vld [vmem:[%s814] ss:$8 sm:$0x3]
        %v817 = vlaneseq
        %v818 = vshrl.u32 %v817, 7
        %v819 = vsub.s32 0, %v818
        %v820 = vrot.slane %v815, %v819
        %v821 = vlaneseq
        %v822 = vshrl.u32 %v821, 7
        %v823 = vsub.s32 1, %v822
        %v824 = vrot.slane %v815, %v823
        %v827 = vmul.f32 %v813, %v820
        %v828 = vmul.f32 %v812, %v824
        %s829 = scalar_lea.vmem [#allocation10], 24
        %v830 = vld [vmem:[%s829] sm:$0xff]
        %v832 = vsel %vm558, %v830, 0
        %834 = vmatprep.subr.mxu0 %v828
        %835 = vmatpush1.msra.mxu0 %v827
        %836 = vmatprep.subr.mxu0 0.0
        %837 = vmatpush1.msra.mxu0 0.0
        %838 = vmatprep.subr.mxu0 0.0
        %839 = vmatpush1.msra.mxu0 0.0
        %840 = vmatprep.subr.mxu0 0.0
        %841 = vmatpush1.msra.mxu0 0.0
        %842 = vmatprep.subr.mxu0 0.0
        %843 = vmatpush1.msra.mxu0 0.0
        %844 = vmatprep.subr.mxu0 0.0
        %845 = vmatpush1.msra.mxu0 0.0
        %846 = vmatprep.subr.mxu0 0.0
        %847 = vmatpush1.msra.mxu0 0.0
        %848 = vmatprep.subr.mxu0 0.0
        %849 = vmatpush1.msra.mxu0 0.0
        %850 = vmatprep.subr.mxu0 0.0
        %851 = vmatpush1.msra.mxu0 0.0
        %852 = vmatprep.subr.mxu0 0.0
        %853 = vmatpush1.msra.mxu0 0.0
        %854 = vmatprep.subr.mxu0 0.0
        %855 = vmatpush1.msra.mxu0 0.0
        %856 = vmatprep.subr.mxu0 0.0
        %857 = vmatpush1.msra.mxu0 0.0
        %858 = vmatprep.subr.mxu0 0.0
        %859 = vmatpush1.msra.mxu0 0.0
        %860 = vmatprep.subr.mxu0 0.0
        %861 = vmatpush1.msra.mxu0 0.0
        %862 = vmatprep.subr.mxu0 0.0
        %863 = vmatpush1.msra.mxu0 0.0
        %864 = vmatprep.subr.mxu0 0.0
        %865 = vmatpush1.msra.mxu0 0.0
        %866 = vmatprep.subr.mxu0 0.0
        %867 = vmatpush1.msra.mxu0 0.0
        %868 = vmatprep.subr.mxu0 0.0
        %869 = vmatpush1.msra.mxu0 0.0
        %870 = vmatprep.subr.mxu0 0.0
        %871 = vmatpush1.msra.mxu0 0.0
        %872 = vmatprep.subr.mxu0 0.0
        %873 = vmatpush1.msra.mxu0 0.0
        %874 = vmatprep.subr.mxu0 0.0
        %875 = vmatpush1.msra.mxu0 0.0
        %876 = vmatprep.subr.mxu0 0.0
        %877 = vmatpush1.msra.mxu0 0.0
        %878 = vmatprep.subr.mxu0 0.0
        %879 = vmatpush1.msra.mxu0 0.0
        %880 = vmatprep.subr.mxu0 0.0
        %881 = vmatpush1.msra.mxu0 0.0
        %882 = vmatprep.subr.mxu0 0.0
        %883 = vmatpush1.msra.mxu0 0.0
        %884 = vmatprep.subr.mxu0 0.0
        %885 = vmatpush1.msra.mxu0 0.0
        %886 = vmatprep.subr.mxu0 0.0
        %887 = vmatpush1.msra.mxu0 0.0
        %888 = vmatprep.subr.mxu0 0.0
        %889 = vmatpush1.msra.mxu0 0.0
        %890 = vmatprep.subr.mxu0 0.0
        %891 = vmatpush1.msra.mxu0 0.0
        %892 = vmatprep.subr.mxu0 0.0
        %893 = vmatpush1.msra.mxu0 0.0
        %894 = vmatprep.subr.mxu0 0.0
        %895 = vmatpush1.msra.mxu0 0.0
        %896 = vmatprep.subr.mxu0 0.0
        %897 = vmatpush1.msra.mxu0 0.0
        %898 = vmatprep.mubr.f32.mxu0 0.0
        %899 = vmatmul.mubr.f32.gmra.mrb[0].mxu0 %v832
        %v900 = vpop.f32.mrb[0].mxu0
        %v901 = vadd.f32 0.0, %v900
        %v902 = vpop.f32.mrb[0].mxu0
        %v903 = vadd.f32 0.0, %v902
        %904 = vdwg.mxu0
        %v905 = vadd.f32 %v805, %v901
        %v906 = vadd.f32 %v806, %v903
        %s907 = scalar_lea.vmem [#allocation10], 32
        %v908 = vld [vmem:[%s907] sm:$0xff]
        %v910 = vsel %vm558, %v908, 0
        %912 = vmatprep.subr.mxu0 %v509
        %913 = vmatpush1.msra.mxu0 %v508
        %914 = vmatprep.subr.mxu0 0.0
        %915 = vmatpush1.msra.mxu0 0.0
        %916 = vmatprep.subr.mxu0 0.0
        %917 = vmatpush1.msra.mxu0 0.0
        %918 = vmatprep.subr.mxu0 0.0
        %919 = vmatpush1.msra.mxu0 0.0
        %920 = vmatprep.subr.mxu0 0.0
        %921 = vmatpush1.msra.mxu0 0.0
        %922 = vmatprep.subr.mxu0 0.0
        %923 = vmatpush1.msra.mxu0 0.0
        %924 = vmatprep.subr.mxu0 0.0
        %925 = vmatpush1.msra.mxu0 0.0
        %926 = vmatprep.subr.mxu0 0.0
        %927 = vmatpush1.msra.mxu0 0.0
        %928 = vmatprep.subr.mxu0 0.0
        %929 = vmatpush1.msra.mxu0 0.0
        %930 = vmatprep.subr.mxu0 0.0
        %931 = vmatpush1.msra.mxu0 0.0
        %932 = vmatprep.subr.mxu0 0.0
        %933 = vmatpush1.msra.mxu0 0.0
        %934 = vmatprep.subr.mxu0 0.0
        %935 = vmatpush1.msra.mxu0 0.0
        %936 = vmatprep.subr.mxu0 0.0
        %937 = vmatpush1.msra.mxu0 0.0
        %938 = vmatprep.subr.mxu0 0.0
        %939 = vmatpush1.msra.mxu0 0.0
        %940 = vmatprep.subr.mxu0 0.0
        %941 = vmatpush1.msra.mxu0 0.0
        %942 = vmatprep.subr.mxu0 0.0
        %943 = vmatpush1.msra.mxu0 0.0
        %944 = vmatprep.subr.mxu0 0.0
        %945 = vmatpush1.msra.mxu0 0.0
        %946 = vmatprep.subr.mxu0 0.0
        %947 = vmatpush1.msra.mxu0 0.0
        %948 = vmatprep.subr.mxu0 0.0
        %949 = vmatpush1.msra.mxu0 0.0
        %950 = vmatprep.subr.mxu0 0.0
        %951 = vmatpush1.msra.mxu0 0.0
        %952 = vmatprep.subr.mxu0 0.0
        %953 = vmatpush1.msra.mxu0 0.0
        %954 = vmatprep.subr.mxu0 0.0
        %955 = vmatpush1.msra.mxu0 0.0
        %956 = vmatprep.subr.mxu0 0.0
        %957 = vmatpush1.msra.mxu0 0.0
        %958 = vmatprep.subr.mxu0 0.0
        %959 = vmatpush1.msra.mxu0 0.0
        %960 = vmatprep.subr.mxu0 0.0
        %961 = vmatpush1.msra.mxu0 0.0
        %962 = vmatprep.subr.mxu0 0.0
        %963 = vmatpush1.msra.mxu0 0.0
        %964 = vmatprep.subr.mxu0 0.0
        %965 = vmatpush1.msra.mxu0 0.0
        %966 = vmatprep.subr.mxu0 0.0
        %967 = vmatpush1.msra.mxu0 0.0
        %968 = vmatprep.subr.mxu0 0.0
        %969 = vmatpush1.msra.mxu0 0.0
        %970 = vmatprep.subr.mxu0 0.0
        %971 = vmatpush1.msra.mxu0 0.0
        %972 = vmatprep.subr.mxu0 0.0
        %973 = vmatpush1.msra.mxu0 0.0
        %974 = vmatprep.subr.mxu0 0.0
        %975 = vmatpush1.msra.mxu0 0.0
        %976 = vmatprep.mubr.f32.mxu0 0.0
        %977 = vmatmul.mubr.f32.gmra.mrb[0].mxu0 %v910
        %v978 = vpop.f32.mrb[0].mxu0
        %v979 = vadd.f32 0.0, %v978
        %v980 = vpop.f32.mrb[0].mxu0
        %v981 = vadd.f32 0.0, %v980
        %982 = vdwg.mxu0
        %v983 = vadd.f32 %v905, %v979
        %v984 = vadd.f32 %v906, %v981
        %985 = vrot.lane.b32.xlu0 %v508, 127
        %v986 = vpop.permute.xlu0 %985
        %987 = vrot.lane.b32.xlu0 %v509, 127
        %v988 = vpop.permute.xlu0 %987
        %vm989 = vcmp.lt.s32.totalorder %v515, 127
        %v990 = vsel %vm989, %v986, %v988
        %v991 = vsel %vm989, %v988, %v986
        %s992 = scalar_lea.vmem [#allocation5], 5
        %v993 = vld [vmem:[%s992] ss:$8 sm:$0x3]
        %v995 = vlaneseq
        %v996 = vshrl.u32 %v995, 7
        %v997 = vsub.s32 0, %v996
        %v998 = vrot.slane %v993, %v997
        %v999 = vlaneseq
        %v1000 = vshrl.u32 %v999, 7
        %v1001 = vsub.s32 1, %v1000
        %v1002 = vrot.slane %v993, %v1001
        %v1005 = vmul.f32 %v990, %v998
        %v1006 = vmul.f32 %v991, %v1002
        %s1007 = scalar_lea.vmem [#allocation10], 40
        %v1008 = vld [vmem:[%s1007] sm:$0xff]
        %v1010 = vsel %vm558, %v1008, 0
        %1012 = vmatprep.subr.mxu0 %v1006
        %1013 = vmatpush1.msra.mxu0 %v1005
        %1014 = vmatprep.subr.mxu0 0.0
        %1015 = vmatpush1.msra.mxu0 0.0
        %1016 = vmatprep.subr.mxu0 0.0
        %1017 = vmatpush1.msra.mxu0 0.0
        %1018 = vmatprep.subr.mxu0 0.0
        %1019 = vmatpush1.msra.mxu0 0.0
        %1020 = vmatprep.subr.mxu0 0.0
        %1021 = vmatpush1.msra.mxu0 0.0
        %1022 = vmatprep.subr.mxu0 0.0
        %1023 = vmatpush1.msra.mxu0 0.0
        %1024 = vmatprep.subr.mxu0 0.0
        %1025 = vmatpush1.msra.mxu0 0.0
        %1026 = vmatprep.subr.mxu0 0.0
        %1027 = vmatpush1.msra.mxu0 0.0
        %1028 = vmatprep.subr.mxu0 0.0
        %1029 = vmatpush1.msra.mxu0 0.0
        %1030 = vmatprep.subr.mxu0 0.0
        %1031 = vmatpush1.msra.mxu0 0.0
        %1032 = vmatprep.subr.mxu0 0.0
        %1033 = vmatpush1.msra.mxu0 0.0
        %1034 = vmatprep.subr.mxu0 0.0
        %1035 = vmatpush1.msra.mxu0 0.0
        %1036 = vmatprep.subr.mxu0 0.0
        %1037 = vmatpush1.msra.mxu0 0.0
        %1038 = vmatprep.subr.mxu0 0.0
        %1039 = vmatpush1.msra.mxu0 0.0
        %1040 = vmatprep.subr.mxu0 0.0
        %1041 = vmatpush1.msra.mxu0 0.0
        %1042 = vmatprep.subr.mxu0 0.0
        %1043 = vmatpush1.msra.mxu0 0.0
        %1044 = vmatprep.subr.mxu0 0.0
        %1045 = vmatpush1.msra.mxu0 0.0
        %1046 = vmatprep.subr.mxu0 0.0
        %1047 = vmatpush1.msra.mxu0 0.0
        %1048 = vmatprep.subr.mxu0 0.0
        %1049 = vmatpush1.msra.mxu0 0.0
        %1050 = vmatprep.subr.mxu0 0.0
        %1051 = vmatpush1.msra.mxu0 0.0
        %1052 = vmatprep.subr.mxu0 0.0
        %1053 = vmatpush1.msra.mxu0 0.0
        %1054 = vmatprep.subr.mxu0 0.0
        %1055 = vmatpush1.msra.mxu0 0.0
        %1056 = vmatprep.subr.mxu0 0.0
        %1057 = vmatpush1.msra.mxu0 0.0
        %1058 = vmatprep.subr.mxu0 0.0
        %1059 = vmatpush1.msra.mxu0 0.0
        %1060 = vmatprep.subr.mxu0 0.0
        %1061 = vmatpush1.msra.mxu0 0.0
        %1062 = vmatprep.subr.mxu0 0.0
        %1063 = vmatpush1.msra.mxu0 0.0
        %1064 = vmatprep.subr.mxu0 0.0
        %1065 = vmatpush1.msra.mxu0 0.0
        %1066 = vmatprep.subr.mxu0 0.0
        %1067 = vmatpush1.msra.mxu0 0.0
        %1068 = vmatprep.subr.mxu0 0.0
        %1069 = vmatpush1.msra.mxu0 0.0
        %1070 = vmatprep.subr.mxu0 0.0
        %1071 = vmatpush1.msra.mxu0 0.0
        %1072 = vmatprep.subr.mxu0 0.0
        %1073 = vmatpush1.msra.mxu0 0.0
        %1074 = vmatprep.subr.mxu0 0.0
        %1075 = vmatpush1.msra.mxu0 0.0
        %1076 = vmatprep.mubr.f32.mxu0 0.0
        %1077 = vmatmul.mubr.f32.gmra.mrb[0].mxu0 %v1010
        %v1078 = vpop.f32.mrb[0].mxu0
        %v1079 = vadd.f32 0.0, %v1078
        %v1080 = vpop.f32.mrb[0].mxu0
        %v1081 = vadd.f32 0.0, %v1080
        %1082 = vdwg.mxu0
        %v1083 = vadd.f32 %v983, %v1079
        %v1084 = vadd.f32 %v984, %v1081
        %1085 = vrot.lane.b32.xlu0 %v508, 113
        %v1086 = vpop.permute.xlu0 %1085
        %1087 = vrot.lane.b32.xlu0 %v509, 113
        %v1088 = vpop.permute.xlu0 %1087
        %vm1089 = vcmp.lt.s32.totalorder %v515, 113
        %v1090 = vsel %vm1089, %v1086, %v1088
        %v1091 = vsel %vm1089, %v1088, %v1086
        %s1092 = scalar_lea.vmem [#allocation5], 6
        %v1093 = vld [vmem:[%s1092] ss:$8 sm:$0x3]
        %v1095 = vlaneseq
        %v1096 = vshrl.u32 %v1095, 7
        %v1097 = vsub.s32 0, %v1096
        %v1098 = vrot.slane %v1093, %v1097
        %v1099 = vlaneseq
        %v1100 = vshrl.u32 %v1099, 7
        %v1101 = vsub.s32 1, %v1100
        %v1102 = vrot.slane %v1093, %v1101
        %v1105 = vmul.f32 %v1090, %v1098
        %v1106 = vmul.f32 %v1091, %v1102
        %s1107 = scalar_lea.vmem [#allocation10], 48
        %v1108 = vld [vmem:[%s1107] sm:$0xff]
        %v1110 = vsel %vm558, %v1108, 0
        %1112 = vmatprep.subr.mxu0 %v1106
        %1113 = vmatpush1.msra.mxu0 %v1105
        %1114 = vmatprep.subr.mxu0 0.0
        %1115 = vmatpush1.msra.mxu0 0.0
        %1116 = vmatprep.subr.mxu0 0.0
        %1117 = vmatpush1.msra.mxu0 0.0
        %1118 = vmatprep.subr.mxu0 0.0
        %1119 = vmatpush1.msra.mxu0 0.0
        %1120 = vmatprep.subr.mxu0 0.0
        %1121 = vmatpush1.msra.mxu0 0.0
        %1122 = vmatprep.subr.mxu0 0.0
        %1123 = vmatpush1.msra.mxu0 0.0
        %1124 = vmatprep.subr.mxu0 0.0
        %1125 = vmatpush1.msra.mxu0 0.0
        %1126 = vmatprep.subr.mxu0 0.0
        %1127 = vmatpush1.msra.mxu0 0.0
        %1128 = vmatprep.subr.mxu0 0.0
        %1129 = vmatpush1.msra.mxu0 0.0
        %1130 = vmatprep.subr.mxu0 0.0
        %1131 = vmatpush1.msra.mxu0 0.0
        %1132 = vmatprep.subr.mxu0 0.0
        %1133 = vmatpush1.msra.mxu0 0.0
        %1134 = vmatprep.subr.mxu0 0.0
        %1135 = vmatpush1.msra.mxu0 0.0
        %1136 = vmatprep.subr.mxu0 0.0
        %1137 = vmatpush1.msra.mxu0 0.0
        %1138 = vmatprep.subr.mxu0 0.0
        %1139 = vmatpush1.msra.mxu0 0.0
        %1140 = vmatprep.subr.mxu0 0.0
        %1141 = vmatpush1.msra.mxu0 0.0
        %1142 = vmatprep.subr.mxu0 0.0
        %1143 = vmatpush1.msra.mxu0 0.0
        %1144 = vmatprep.subr.mxu0 0.0
        %1145 = vmatpush1.msra.mxu0 0.0
        %1146 = vmatprep.subr.mxu0 0.0
        %1147 = vmatpush1.msra.mxu0 0.0
        %1148 = vmatprep.subr.mxu0 0.0
        %1149 = vmatpush1.msra.mxu0 0.0
        %1150 = vmatprep.subr.mxu0 0.0
        %1151 = vmatpush1.msra.mxu0 0.0
        %1152 = vmatprep.subr.mxu0 0.0
        %1153 = vmatpush1.msra.mxu0 0.0
        %1154 = vmatprep.subr.mxu0 0.0
        %1155 = vmatpush1.msra.mxu0 0.0
        %1156 = vmatprep.subr.mxu0 0.0
        %1157 = vmatpush1.msra.mxu0 0.0
        %1158 = vmatprep.subr.mxu0 0.0
        %1159 = vmatpush1.msra.mxu0 0.0
        %1160 = vmatprep.subr.mxu0 0.0
        %1161 = vmatpush1.msra.mxu0 0.0
        %1162 = vmatprep.subr.mxu0 0.0
        %1163 = vmatpush1.msra.mxu0 0.0
        %1164 = vmatprep.subr.mxu0 0.0
        %1165 = vmatpush1.msra.mxu0 0.0
        %1166 = vmatprep.subr.mxu0 0.0
        %1167 = vmatpush1.msra.mxu0 0.0
        %1168 = vmatprep.subr.mxu0 0.0
        %1169 = vmatpush1.msra.mxu0 0.0
        %1170 = vmatprep.subr.mxu0 0.0
        %1171 = vmatpush1.msra.mxu0 0.0
        %1172 = vmatprep.subr.mxu0 0.0
        %1173 = vmatpush1.msra.mxu0 0.0
        %1174 = vmatprep.subr.mxu0 0.0
        %1175 = vmatpush1.msra.mxu0 0.0
        %1176 = vmatprep.mubr.f32.mxu0 0.0
        %1177 = vmatmul.mubr.f32.gmra.mrb[0].mxu0 %v1110
        %v1178 = vpop.f32.mrb[0].mxu0
        %v1179 = vadd.f32 0.0, %v1178
        %v1180 = vpop.f32.mrb[0].mxu0
        %v1181 = vadd.f32 0.0, %v1180
        %1182 = vdwg.mxu0
        %v1183 = vadd.f32 %v1083, %v1179
        %v1184 = vadd.f32 %v1084, %v1181
        %1185 = vrot.lane.b32.xlu0 %v508, 112
        %v1186 = vpop.permute.xlu0 %1185
        %1187 = vrot.lane.b32.xlu0 %v509, 112
        %v1188 = vpop.permute.xlu0 %1187
        %vm1189 = vcmp.lt.s32.totalorder %v515, 112
        %v1190 = vsel %vm1189, %v1186, %v1188
        %v1191 = vsel %vm1189, %v1188, %v1186
        %s1192 = scalar_lea.vmem [#allocation5], 7
        %v1193 = vld [vmem:[%s1192] ss:$8 sm:$0x3]
        %v1195 = vlaneseq
        %v1196 = vshrl.u32 %v1195, 7
        %v1197 = vsub.s32 0, %v1196
        %v1198 = vrot.slane %v1193, %v1197
        %v1199 = vlaneseq
        %v1200 = vshrl.u32 %v1199, 7
        %v1201 = vsub.s32 1, %v1200
        %v1202 = vrot.slane %v1193, %v1201
        %v1205 = vmul.f32 %v1190, %v1198
        %v1206 = vmul.f32 %v1191, %v1202
        %s1207 = scalar_lea.vmem [#allocation10], 56
        %v1208 = vld [vmem:[%s1207] sm:$0xff]
        %v1210 = vsel %vm558, %v1208, 0
        %1212 = vmatprep.subr.mxu0 %v1206
        %1213 = vmatpush1.msra.mxu0 %v1205
        %1214 = vmatprep.subr.mxu0 0.0
        %1215 = vmatpush1.msra.mxu0 0.0
        %1216 = vmatprep.subr.mxu0 0.0
        %1217 = vmatpush1.msra.mxu0 0.0
        %1218 = vmatprep.subr.mxu0 0.0
        %1219 = vmatpush1.msra.mxu0 0.0
        %1220 = vmatprep.subr.mxu0 0.0
        %1221 = vmatpush1.msra.mxu0 0.0
        %1222 = vmatprep.subr.mxu0 0.0
        %1223 = vmatpush1.msra.mxu0 0.0
        %1224 = vmatprep.subr.mxu0 0.0
        %1225 = vmatpush1.msra.mxu0 0.0
        %1226 = vmatprep.subr.mxu0 0.0
        %1227 = vmatpush1.msra.mxu0 0.0
        %1228 = vmatprep.subr.mxu0 0.0
        %1229 = vmatpush1.msra.mxu0 0.0
        %1230 = vmatprep.subr.mxu0 0.0
        %1231 = vmatpush1.msra.mxu0 0.0
        %1232 = vmatprep.subr.mxu0 0.0
        %1233 = vmatpush1.msra.mxu0 0.0
        %1234 = vmatprep.subr.mxu0 0.0
        %1235 = vmatpush1.msra.mxu0 0.0
        %1236 = vmatprep.subr.mxu0 0.0
        %1237 = vmatpush1.msra.mxu0 0.0
        %1238 = vmatprep.subr.mxu0 0.0
        %1239 = vmatpush1.msra.mxu0 0.0
        %1240 = vmatprep.subr.mxu0 0.0
        %1241 = vmatpush1.msra.mxu0 0.0
        %1242 = vmatprep.subr.mxu0 0.0
        %1243 = vmatpush1.msra.mxu0 0.0
        %1244 = vmatprep.subr.mxu0 0.0
        %1245 = vmatpush1.msra.mxu0 0.0
        %1246 = vmatprep.subr.mxu0 0.0
        %1247 = vmatpush1.msra.mxu0 0.0
        %1248 = vmatprep.subr.mxu0 0.0
        %1249 = vmatpush1.msra.mxu0 0.0
        %1250 = vmatprep.subr.mxu0 0.0
        %1251 = vmatpush1.msra.mxu0 0.0
        %1252 = vmatprep.subr.mxu0 0.0
        %1253 = vmatpush1.msra.mxu0 0.0
        %1254 = vmatprep.subr.mxu0 0.0
        %1255 = vmatpush1.msra.mxu0 0.0
        %1256 = vmatprep.subr.mxu0 0.0
        %1257 = vmatpush1.msra.mxu0 0.0
        %1258 = vmatprep.subr.mxu0 0.0
        %1259 = vmatpush1.msra.mxu0 0.0
        %1260 = vmatprep.subr.mxu0 0.0
        %1261 = vmatpush1.msra.mxu0 0.0
        %1262 = vmatprep.subr.mxu0 0.0
        %1263 = vmatpush1.msra.mxu0 0.0
        %1264 = vmatprep.subr.mxu0 0.0
        %1265 = vmatpush1.msra.mxu0 0.0
        %1266 = vmatprep.subr.mxu0 0.0
        %1267 = vmatpush1.msra.mxu0 0.0
        %1268 = vmatprep.subr.mxu0 0.0
        %1269 = vmatpush1.msra.mxu0 0.0
        %1270 = vmatprep.subr.mxu0 0.0
        %1271 = vmatpush1.msra.mxu0 0.0
        %1272 = vmatprep.subr.mxu0 0.0
        %1273 = vmatpush1.msra.mxu0 0.0
        %1274 = vmatprep.subr.mxu0 0.0
        %1275 = vmatpush1.msra.mxu0 0.0
        %1276 = vmatprep.mubr.f32.mxu0 0.0
        %1277 = vmatmul.mubr.f32.gmra.mrb[0].mxu0 %v1210
        %v1278 = vpop.f32.mrb[0].mxu0
        %v1279 = vadd.f32 0.0, %v1278
        %v1280 = vpop.f32.mrb[0].mxu0
        %v1281 = vadd.f32 0.0, %v1280
        %1282 = vdwg.mxu0
        %v1283 = vadd.f32 %v1183, %v1279
        %v1284 = vadd.f32 %v1184, %v1281
        %1285 = vrot.lane.b32.xlu0 %v508, 111
        %v1286 = vpop.permute.xlu0 %1285
        %1287 = vrot.lane.b32.xlu0 %v509, 111
        %v1288 = vpop.permute.xlu0 %1287
        %vm1289 = vcmp.lt.s32.totalorder %v515, 111
        %v1290 = vsel %vm1289, %v1286, %v1288
        %v1291 = vsel %vm1289, %v1288, %v1286
        %s1292 = scalar_lea.vmem [#allocation5], 16
        %v1293 = vld [vmem:[%s1292] ss:$8 sm:$0x3]
        %v1295 = vlaneseq
        %v1296 = vshrl.u32 %v1295, 7
        %v1297 = vsub.s32 0, %v1296
        %v1298 = vrot.slane %v1293, %v1297
        %v1299 = vlaneseq
        %v1300 = vshrl.u32 %v1299, 7
        %v1301 = vsub.s32 1, %v1300
        %v1302 = vrot.slane %v1293, %v1301
        %v1305 = vmul.f32 %v1290, %v1298
        %v1306 = vmul.f32 %v1291, %v1302
        %s1307 = scalar_lea.vmem [#allocation10], 64
        %v1308 = vld [vmem:[%s1307] sm:$0xff]
        %v1310 = vsel %vm558, %v1308, 0
        %1312 = vmatprep.subr.mxu0 %v1306
        %1313 = vmatpush1.msra.mxu0 %v1305
        %1314 = vmatprep.subr.mxu0 0.0
        %1315 = vmatpush1.msra.mxu0 0.0
        %1316 = vmatprep.subr.mxu0 0.0
        %1317 = vmatpush1.msra.mxu0 0.0
        %1318 = vmatprep.subr.mxu0 0.0
        %1319 = vmatpush1.msra.mxu0 0.0
        %1320 = vmatprep.subr.mxu0 0.0
        %1321 = vmatpush1.msra.mxu0 0.0
        %1322 = vmatprep.subr.mxu0 0.0
        %1323 = vmatpush1.msra.mxu0 0.0
        %1324 = vmatprep.subr.mxu0 0.0
        %1325 = vmatpush1.msra.mxu0 0.0
        %1326 = vmatprep.subr.mxu0 0.0
        %1327 = vmatpush1.msra.mxu0 0.0
        %1328 = vmatprep.subr.mxu0 0.0
        %1329 = vmatpush1.msra.mxu0 0.0
        %1330 = vmatprep.subr.mxu0 0.0
        %1331 = vmatpush1.msra.mxu0 0.0
        %1332 = vmatprep.subr.mxu0 0.0
        %1333 = vmatpush1.msra.mxu0 0.0
        %1334 = vmatprep.subr.mxu0 0.0
        %1335 = vmatpush1.msra.mxu0 0.0
        %1336 = vmatprep.subr.mxu0 0.0
        %1337 = vmatpush1.msra.mxu0 0.0
        %1338 = vmatprep.subr.mxu0 0.0
        %1339 = vmatpush1.msra.mxu0 0.0
        %1340 = vmatprep.subr.mxu0 0.0
        %1341 = vmatpush1.msra.mxu0 0.0
        %1342 = vmatprep.subr.mxu0 0.0
        %1343 = vmatpush1.msra.mxu0 0.0
        %1344 = vmatprep.subr.mxu0 0.0
        %1345 = vmatpush1.msra.mxu0 0.0
        %1346 = vmatprep.subr.mxu0 0.0
        %1347 = vmatpush1.msra.mxu0 0.0
        %1348 = vmatprep.subr.mxu0 0.0
        %1349 = vmatpush1.msra.mxu0 0.0
        %1350 = vmatprep.subr.mxu0 0.0
        %1351 = vmatpush1.msra.mxu0 0.0
        %1352 = vmatprep.subr.mxu0 0.0
        %1353 = vmatpush1.msra.mxu0 0.0
        %1354 = vmatprep.subr.mxu0 0.0
        %1355 = vmatpush1.msra.mxu0 0.0
        %1356 = vmatprep.subr.mxu0 0.0
        %1357 = vmatpush1.msra.mxu0 0.0
        %1358 = vmatprep.subr.mxu0 0.0
        %1359 = vmatpush1.msra.mxu0 0.0
        %1360 = vmatprep.subr.mxu0 0.0
        %1361 = vmatpush1.msra.mxu0 0.0
        %1362 = vmatprep.subr.mxu0 0.0
        %1363 = vmatpush1.msra.mxu0 0.0
        %1364 = vmatprep.subr.mxu0 0.0
        %1365 = vmatpush1.msra.mxu0 0.0
        %1366 = vmatprep.subr.mxu0 0.0
        %1367 = vmatpush1.msra.mxu0 0.0
        %1368 = vmatprep.subr.mxu0 0.0
        %1369 = vmatpush1.msra.mxu0 0.0
        %1370 = vmatprep.subr.mxu0 0.0
        %1371 = vmatpush1.msra.mxu0 0.0
        %1372 = vmatprep.subr.mxu0 0.0
        %1373 = vmatpush1.msra.mxu0 0.0
        %1374 = vmatprep.subr.mxu0 0.0
        %1375 = vmatpush1.msra.mxu0 0.0
        %1376 = vmatprep.mubr.f32.mxu0 0.0
        %1377 = vmatmul.mubr.f32.gmra.mrb[0].mxu0 %v1310
        %v1378 = vpop.f32.mrb[0].mxu0
        %v1379 = vadd.f32 0.0, %v1378
        %v1380 = vpop.f32.mrb[0].mxu0
        %v1381 = vadd.f32 0.0, %v1380
        %1382 = vdwg.mxu0
        %v1383 = vadd.f32 %v1283, %v1379
        %v1384 = vadd.f32 %v1284, %v1381
        %v1385 = vld [vmem:[#allocation11] sm:$0xff]
        %1387 = vset.pattern.permute.xlu0 0
        %1388 = vperm.xlu0 %1387, %v1385
        %v1389 = vpop.permute.xlu0 %1388
        %v1391 = vadd.f32 %v1383, %v1389
        %v1392 = vadd.f32 %v1384, %v1389
        %v1393 = vmax.f32 %v1391, 0.0
        %v1394 = vmax.f32 %v1392, 0.0
        %v1395 = vld [vmem:[#allocation13] sm:$0xff]
        %v1396 = vld [vmem:[#allocation13 + $0x8] sm:$0xff]
        %v1397 = vld [vmem:[#allocation14] sm:$0xff]
        %v1398 = vld [vmem:[#allocation14 + $0x8] sm:$0xff]
        %1400 = vset.pattern.permute.xlu0 0
        %1401 = vperm.xlu0 %1400, %v1397
        %v1402 = vpop.permute.xlu0 %1401
        %1405 = vset.pattern.permute.xlu0 0
        %1406 = vperm.xlu0 %1405, %v1398
        %v1407 = vpop.permute.xlu0 %1406
        %v1410 = vsel %vm558, %v1395, 0
        %v1413 = vsel %vm558, %v1396, 0
        %1415 = vmatprep.subr.mxu0 %v1394
        %1416 = vmatpush1.msra.mxu0 %v1393
        %1417 = vmatprep.subr.mxu0 0.0
        %1418 = vmatpush1.msra.mxu0 0.0
        %1419 = vmatprep.subr.mxu0 0.0
        %1420 = vmatpush1.msra.mxu0 0.0
        %1421 = vmatprep.subr.mxu0 0.0
        %1422 = vmatpush1.msra.mxu0 0.0
        %1423 = vmatprep.subr.mxu0 0.0
        %1424 = vmatpush1.msra.mxu0 0.0
        %1425 = vmatprep.subr.mxu0 0.0
        %1426 = vmatpush1.msra.mxu0 0.0
        %1427 = vmatprep.subr.mxu0 0.0
        %1428 = vmatpush1.msra.mxu0 0.0
        %1429 = vmatprep.subr.mxu0 0.0
        %1430 = vmatpush1.msra.mxu0 0.0
        %1431 = vmatprep.subr.mxu0 0.0
        %1432 = vmatpush1.msra.mxu0 0.0
        %1433 = vmatprep.subr.mxu0 0.0
        %1434 = vmatpush1.msra.mxu0 0.0
        %1435 = vmatprep.subr.mxu0 0.0
        %1436 = vmatpush1.msra.mxu0 0.0
        %1437 = vmatprep.subr.mxu0 0.0
        %1438 = vmatpush1.msra.mxu0 0.0
        %1439 = vmatprep.subr.mxu0 0.0
        %1440 = vmatpush1.msra.mxu0 0.0
        %1441 = vmatprep.subr.mxu0 0.0
        %1442 = vmatpush1.msra.mxu0 0.0
        %1443 = vmatprep.subr.mxu0 0.0
        %1444 = vmatpush1.msra.mxu0 0.0
        %1445 = vmatprep.subr.mxu0 0.0
        %1446 = vmatpush1.msra.mxu0 0.0
        %1447 = vmatprep.subr.mxu0 0.0
        %1448 = vmatpush1.msra.mxu0 0.0
        %1449 = vmatprep.subr.mxu0 0.0
        %1450 = vmatpush1.msra.mxu0 0.0
        %1451 = vmatprep.subr.mxu0 0.0
        %1452 = vmatpush1.msra.mxu0 0.0
        %1453 = vmatprep.subr.mxu0 0.0
        %1454 = vmatpush1.msra.mxu0 0.0
        %1455 = vmatprep.subr.mxu0 0.0
        %1456 = vmatpush1.msra.mxu0 0.0
        %1457 = vmatprep.subr.mxu0 0.0
        %1458 = vmatpush1.msra.mxu0 0.0
        %1459 = vmatprep.subr.mxu0 0.0
        %1460 = vmatpush1.msra.mxu0 0.0
        %1461 = vmatprep.subr.mxu0 0.0
        %1462 = vmatpush1.msra.mxu0 0.0
        %1463 = vmatprep.subr.mxu0 0.0
        %1464 = vmatpush1.msra.mxu0 0.0
        %1465 = vmatprep.subr.mxu0 0.0
        %1466 = vmatpush1.msra.mxu0 0.0
        %1467 = vmatprep.subr.mxu0 0.0
        %1468 = vmatpush1.msra.mxu0 0.0
        %1469 = vmatprep.subr.mxu0 0.0
        %1470 = vmatpush1.msra.mxu0 0.0
        %1471 = vmatprep.subr.mxu0 0.0
        %1472 = vmatpush1.msra.mxu0 0.0
        %1473 = vmatprep.subr.mxu0 0.0
        %1474 = vmatpush1.msra.mxu0 0.0
        %1475 = vmatprep.subr.mxu0 0.0
        %1476 = vmatpush1.msra.mxu0 0.0
        %1477 = vmatprep.subr.mxu0 0.0
        %1478 = vmatpush1.msra.mxu0 0.0
        %1479 = vmatprep.mubr.f32.mxu0 0.0
        %1480 = vmatmul.mubr.f32.gmra.mrb[0].mxu0 %v1410
        %v1481 = vpop.f32.mrb[0].mxu0
        %v1482 = vadd.f32 %v1402, %v1481
        %v1483 = vpop.f32.mrb[0].mxu0
        %v1484 = vadd.f32 %v1402, %v1483
        %1485 = vmatprep.mubr.f32.mxu0 0.0
        %1486 = vmatmul.mubr.f32.gmra.mrb[0].mxu0 %v1413
        %v1487 = vpop.f32.mrb[0].mxu0
        %v1488 = vadd.f32 %v1407, %v1487
        %v1489 = vpop.f32.mrb[0].mxu0
        %v1490 = vadd.f32 %v1407, %v1489
        %1491 = vdwg.mxu0
        %v1492 = vadd.f32 %v1482, %v422
        %v1493 = vadd.f32 %v1484, %v423
        %v1494 = vadd.f32 %v1488, %v424
        %v1495 = vadd.f32 %v1490, %v425
        %v1496 = vmax.f32 %v1492, 0.0
        %v1497 = vmax.f32 %v1493, 0.0
        %v1498 = vmax.f32 %v1494, 0.0
        %v1499 = vmax.f32 %v1495, 0.0
        %1500 = vst [vmem:[%s419] sm:$0xff] %v1496
        %1501 = vst [vmem:[%s419 + $0x8] sm:$0xff] %v1497
        %1502 = vst [vmem:[%s419 + $0x10] sm:$0xff] %v1498
        %1503 = vst [vmem:[%s419 + $0x18] sm:$0xff] %v1499
        %s1504 = sand.u32 %s210, 1
        %s1505 = scalar_lea.sflag [#allocation4], %s1504
        %s1506 = sand.u32 %s210, 1
        %s1507 = smul.addr %s1506, 32
        %s1508 = scalar_lea.vmem [#allocation16], %s1507
        // Predicated region
        $region85: #{tpu_custom_call.1} parent=51 // pred_check
          %p1509 = pneg %p220
        $region86: #{tpu_custom_call.1} parent=51 // pred_check_branch
          %1511 = sbr.rel (%p1509) target = $region88
        $region87: #{tpu_custom_call.1} parent=51 // pred_region
          %s1512 = smul.u32 2, %s29
          %s1514 = ssub.s32 512, 512
          %1515 = vsyncadd %s1505, %s1514
          %s1516 = smul.addr %s1512, 128
          %s1517 = scalar_lea.hbm %s8, %s1516
          %s1518 = sshll.u32 %s1508, 4
          %s1519 = int_to_ptr.vmem [resolvable:$true] %s1518
          %1524 = dma.vmem_to_hbm [thread:$0]  %s1519, 512, %s1517, %s1505, 256, 512, 16
        $region88: #{tpu_custom_call.1} parent=51 // pred_fallthru
          _
      $region52: #{tpu_custom_call.1} parent=5 // pred_fallthru
        _
      %p1525 = scmp.le.s32.totalorder 2, %s24
      // Predicated region
      $region89: #{tpu_custom_call.1} parent=5 // pred_check
        %p1526 = pneg %p1525
      $region90: #{tpu_custom_call.1} parent=5 // pred_check_branch
        %1528 = sbr.rel (%p1526) target = $region92
      $region91: #{tpu_custom_call.1} parent=5 // pred_region
        %s1529 = ssub.s32 %s24, 2
        // Predicated region
        $region93: #{tpu_custom_call.1} parent=91 // pred_check
          %p1530 = pneg %p226
        $region94: #{tpu_custom_call.1} parent=91 // pred_check_branch
          %1532 = sbr.rel (%p1530) target = $region96
        $region95: #{tpu_custom_call.1} parent=91 // pred_region
          %s1533 = sand.u32 %s211, 1
          %s1534 = scalar_lea.sflag [#allocation4], %s1533
          %s1535 = sand.u32 %s211, 1
          %s1536 = smul.addr %s1535, 32
          %s1537 = scalar_lea.vmem [#allocation16], %s1536
          %1538 = dma.done %s1534, 512
        $region96: #{tpu_custom_call.1} parent=91 // pred_fallthru
          _
      $region92: #{tpu_custom_call.1} parent=5 // pred_fallthru
        _
    $region6: #{tpu_custom_call.1} parent=1 // loop_footer
      %s28 = sadd.s32 1, %s24
    $region7: #{tpu_custom_call.1} parent=1 // loop_footer_branch
      %23 = sbr.rel target = $region3
    $region8: #{tpu_custom_call.1} parent=1 // loop_exit
      _
    %1539 = vsyncpa [#allocation3], 1
    %s1540 = scalar_lea.sflag [#allocation3], 1
    %1541 = vsyncpa %s1540, 1
    %1542 = vsyncpa [#allocation6], 1
    %1543 = vsyncpa [#allocation9], 1
    %1544 = vsyncpa [#allocation12], 1
    %1545 = vsyncpa [#allocation15], 1
    %1546 = vsyncpa [#allocation4], 1
    %s1547 = scalar_lea.sflag [#allocation4], 1
    %1548 = vsyncpa %s1547, 1

</llo_original>
